<compile_context>
chip_gen: v7x
topology: tpu7x:2x2x1
jax: 0.10.0
libtpu: 0.0.40
codegen_flags: <defaults>
</compile_context>

<pallas_src>
import functools

import numpy as np
import jax
import jax.numpy as jnp
from jax.experimental import pallas as pl
from jax.experimental.pallas import tpu as pltpu

_EPS = 1e-5
_LANE = 128


def _round_up(x, m):
    return (x + m - 1) // m * m


def _plan_rows(rows, target=1024):
    """Row-block size (multiple of 8) and padded row count for flat passes."""
    blk = min(_round_up(rows, 8), target)
    return blk, _round_up(rows, blk)


def _compiler_params():
    # Generation-aware VMEM limit: 3/4 of physical VMEM, capped at 100 MiB.
    try:
        cap = int(pltpu.get_tpu_info().vmem_capacity_bytes)
    except Exception:   # noqa: BLE001 - conservative fallback on any query issue
        cap = 64 * 1024 * 1024
    limit = min(cap * 3 // 4, 100 * 1024 * 1024)
    return pltpu.CompilerParams(dimension_semantics=("parallel",),
                                vmem_limit_bytes=int(limit))


def _fold_bn(s_sum, q_sum, count, gamma_p, beta_p):
    # One-pass batch stats (sum, sum^2) -> folded affine (scale, bias), f32.
    mean = s_sum / count
    var = jnp.maximum(q_sum / count - mean * mean, 0.0)      # biased variance
    scale = gamma_p * jax.lax.rsqrt(var + _EPS)
    bias = beta_p - mean * scale
    return scale, bias


# --------------------------------------------------------------------------- #
# Pass A (small cin): conv1 as ONE bf16 matmul on the wrapper-built im2col
# matrix (K = 9*cin padded once to a lane multiple), gridded over flattened
# row blocks; optional 1x1 downsample conv on the centre-tap matrix.
# --------------------------------------------------------------------------- #
def _conv1_small_kernel(*refs, with_down):
    if with_down:
        (cols_ref, xd_ref, w1_ref, wd_ref,
         y1_ref, s1_ref, q1_ref, yd_ref, sd_ref, qd_ref) = refs
    else:
        cols_ref, w1_ref, y1_ref, s1_ref, q1_ref = refs

    y1 = jnp.dot(cols_ref[...], w1_ref[...], preferred_element_type=jnp.float32)
    y1_ref[...] = y1.astype(y1_ref.dtype)
    s1_ref[...] = jnp.sum(y1, axis=0, keepdims=True)
    q1_ref[...] = jnp.sum(y1 * y1, axis=0, keepdims=True)

    if with_down:
        yd = jnp.dot(xd_ref[...], wd_ref[...], preferred_element_type=jnp.float32)
        yd_ref[...] = yd.astype(yd_ref.dtype)
        sd_ref[...] = jnp.sum(yd, axis=0, keepdims=True)
        qd_ref[...] = jnp.sum(yd * yd, axis=0, keepdims=True)


# --------------------------------------------------------------------------- #
# Pass A (large cin): conv1 (3x3 stride s) for one image from the
# phase-decomposed padded input, per-tap bf16 dot-accumulation into f32;
# optional 1x1 stride-s downsample conv reuses the centre tap.
# --------------------------------------------------------------------------- #
def _conv1_big_kernel(*refs, oh, ow, stride, hs, with_down):
    if with_down:
        (xph_ref, w1_ref, wd_ref,
         y1_ref, s1_ref, q1_ref, yd_ref, sd_ref, qd_ref) = refs
    else:
        xph_ref, w1_ref, y1_ref, s1_ref, q1_ref = refs

    m = oh * ow
    acc = None
    centre = None
    for kh in range(3):
        for kw in range(3):
            ph = (kh % stride) * stride + (kw % stride)
            r0 = ph * hs + kh // stride
            c0 = kw // stride
            tap = xph_ref[r0:r0 + oh, c0:c0 + ow, :].reshape(m, -1)
            tap = tap.astype(jnp.bfloat16)
            if kh == 1 and kw == 1:
                centre = tap
            part = jnp.dot(tap, w1_ref[kh * 3 + kw],
                           preferred_element_type=jnp.float32)
            acc = part if acc is None else acc + part

    y1_ref[...] = acc.astype(y1_ref.dtype)
    s1_ref[...] = jnp.sum(acc, axis=0, keepdims=True)
    q1_ref[...] = jnp.sum(acc * acc, axis=0, keepdims=True)

    if with_down:
        yd = jnp.dot(centre, wd_ref[...], preferred_element_type=jnp.float32)
        yd_ref[...] = yd.astype(yd_ref.dtype)
        sd_ref[...] = jnp.sum(yd, axis=0, keepdims=True)
        qd_ref[...] = jnp.sum(yd * yd, axis=0, keepdims=True)


# --------------------------------------------------------------------------- #
# Pass B: BN1 affine + ReLU, then conv2 (3x3 stride 1 pad 1) for one image via
# per-tap bf16 dot-accumulation, plus sum / sum^2 partials for BN2.
# --------------------------------------------------------------------------- #
def _conv2_kernel(y1_ref, sc1_ref, b1_ref, w2_ref,
                  y2_ref, s2_ref, q2_ref, pad_ref, *, oh, ow, cp):
    m = oh * ow
    a1 = jnp.maximum(y1_ref[...].astype(jnp.float32) * sc1_ref[...]
                     + b1_ref[...], 0.0)                       # BN1 + ReLU

    # Zero only the 1-pixel halo, every step (megacore-safe: each core has its
    # own persistent scratch, so a one-time program_id==0 init is not enough).
    zrow = jnp.zeros((1, ow + 2, cp), jnp.float32)
    zcol = jnp.zeros((oh, 1, cp), jnp.float32)
    pad_ref[0:1, :, :] = zrow
    pad_ref[oh + 1:oh + 2, :, :] = zrow
    pad_ref[1:oh + 1, 0:1, :] = zcol
    pad_ref[1:oh + 1, ow + 1:ow + 2, :] = zcol
    pad_ref[1:oh + 1, 1:ow + 1, :] = a1.reshape(oh, ow, cp)

    acc = None
    for kh in range(3):
        for kw in range(3):
            tap = pad_ref[kh:kh + oh, kw:kw + ow, :].reshape(m, cp)
            part = jnp.dot(tap.astype(jnp.bfloat16), w2_ref[kh * 3 + kw],
                           preferred_element_type=jnp.float32)
            acc = part if acc is None else acc + part

    y2_ref[...] = acc.astype(y2_ref.dtype)
    s2_ref[...] = jnp.sum(acc, axis=0, keepdims=True)
    q2_ref[...] = jnp.sum(acc * acc, axis=0, keepdims=True)


# --------------------------------------------------------------------------- #
# Pass C: BN2 affine, optional normalized residual add, final ReLU.
# Gridded over flattened lane-dense row blocks (purely memory bound).
# --------------------------------------------------------------------------- #
def _finalize_kernel(*refs, res):
    if res:
        y2_ref, sc2_ref, b2_ref, sd_ref, scd_ref, bd_ref, out_ref = refs
    else:
        y2_ref, sc2_ref, b2_ref, out_ref = refs
    y = y2_ref[...].astype(jnp.float32) * sc2_ref[...] + b2_ref[...]
    if res:
        y = y + sd_ref[...].astype(jnp.float32) * scd_ref[...] + bd_ref[...]
    out_ref[...] = jnp.maximum(y, 0.0)


# --------------------------------------------------------------------------- #
# Wrapper
# --------------------------------------------------------------------------- #
@functools.partial(jax.jit, static_argnames=("stride", "res", "downsample"))
def basic_block_forward(x_nchw, params, *, stride=2, res=0, downsample=1):
    w1, g1, b1, w2, g2, b2, wd, gd, bd = params                # HWIO weights
    x = jnp.transpose(x_nchw, (0, 2, 3, 1)).astype(jnp.float32)  # NCHW -> NHWC
    n, h, w, cin = x.shape
    cout = w1.shape[-1]
    oh = (h + 2 - 3) // stride + 1
    ow = (w + 2 - 3) // stride + 1
    m = oh * ow
    cout_p = _round_up(cout, _LANE)                            # lane-dense channels
    with_down = (res == 1 and downsample == 1)
    count = float(n * m)                                       # BN sample count
    small_cin = cin < 64
    cparams = _compiler_params()

    def _pad_vec(v):
        return jnp.zeros((1, cout_p), jnp.float32).at[:, :cout].set(
            v.reshape(1, cout).astype(jnp.float32))

    g1p, b1p = _pad_vec(g1), _pad_vec(b1)
    g2p, b2p = _pad_vec(g2), _pad_vec(b2)

    # Common per-image specs for the (n, m, cout_p) bf16 intermediates.
    per_img_rows = pl.BlockSpec((None, m, cout_p), lambda i: (i, 0, 0))
    per_img_stat = pl.BlockSpec((None, 1, cout_p), lambda i: (i, 0, 0))
    vec_spec = pl.BlockSpec((1, cout_p), lambda i: (0, 0))
    img_bf16 = jax.ShapeDtypeStruct((n, m, cout_p), jnp.bfloat16)
    stat_img = jax.ShapeDtypeStruct((n, 1, cout_p), jnp.float32)

    yd_raw = None
    sd = qd = None

    # ------------------------------ pass A ---------------------------------- #
    if small_cin:
        # Wrapper-side im2col: K = 9*cin padded once to a lane multiple (no
        # 32x channel-padding blow-up for tiny cin).
        xp = jnp.pad(x, ((0, 0), (1, 1), (1, 1), (0, 0)))
        taps = []
        for kh in range(3):
            for kw in range(3):
                taps.append(xp[:, kh:kh + (oh - 1) * stride + 1:stride,
                               kw:kw + (ow - 1) * stride + 1:stride, :])
        k1 = 9 * cin
        k1p = _round_up(k1, _LANE)
        cols = jnp.concatenate(taps, axis=-1).reshape(n * m, k1)
        cols = jnp.pad(cols, ((0, 0), (0, k1p - k1)))

        rows = n * m
        row_blk, r_pad = _plan_rows(rows)
        n_blk = r_pad // row_blk
        cols = jnp.pad(cols, ((0, r_pad - rows), (0, 0))).astype(jnp.bfloat16)

        w1p = jnp.zeros((k1p, cout_p), jnp.float32).at[:k1, :cout].set(
            w1.reshape(k1, cout)).astype(jnp.bfloat16)

        flat_spec = pl.BlockSpec((row_blk, cout_p), lambda r: (r, 0))
        flat_shape = jax.ShapeDtypeStruct((r_pad, cout_p), jnp.bfloat16)
        stat_spec = pl.BlockSpec((None, 1, cout_p), lambda r: (r, 0, 0))
        stat_shape = jax.ShapeDtypeStruct((n_blk, 1, cout_p), jnp.float32)
        cols_spec = pl.BlockSpec((row_blk, k1p), lambda r: (r, 0))
        w1_spec = pl.BlockSpec((k1p, cout_p), lambda r: (0, 0))

        if with_down:
            cin_pd = _round_up(cin, _LANE)
            xd = taps[4].reshape(n * m, cin)                   # centre tap
            xd = jnp.pad(xd, ((0, r_pad - rows),
                              (0, cin_pd - cin))).astype(jnp.bfloat16)
            wdp = jnp.zeros((cin_pd, cout_p), jnp.float32).at[:cin, :cout].set(
                wd.reshape(cin, cout)).astype(jnp.bfloat16)
            inputs = [cols, xd, w1p, wdp]
            in_specs = [cols_spec,
                        pl.BlockSpec((row_blk, cin_pd), lambda r: (r, 0)),
                        w1_spec,
                        pl.BlockSpec((cin_pd, cout_p), lambda r: (0, 0))]
            out_specs = (flat_spec, stat_spec, stat_spec,
                         flat_spec, stat_spec, stat_spec)
            out_shapes = (flat_shape, stat_shape, stat_shape,
                          flat_shape, stat_shape, stat_shape)
        else:
            inputs = [cols, w1p]
            in_specs = [cols_spec, w1_spec]
            out_specs = (flat_spec, stat_spec, stat_spec)
            out_shapes = (flat_shape, stat_shape, stat_shape)

        kern_a = functools.partial(_conv1_small_kernel, with_down=with_down)
        outs_a = pl.pallas_call(
            kern_a, grid=(n_blk,),
            in_specs=in_specs, out_specs=out_specs, out_shape=out_shapes,
            compiler_params=cparams)(*inputs)

        if with_down:
            y1f, s1, q1, ydf, sd, qd = outs_a
            yd_raw = ydf[:rows].reshape(n, m, cout_p)
        else:
            y1f, s1, q1 = outs_a
        y1_raw = y1f[:rows].reshape(n, m, cout_p)
    else:
        # Phase-decomposed padded input: every 3x3 tap is a unit-stride window
        # of one phase plane; per-tap bf16 dots accumulate into f32 in-kernel.
        cin_p = _round_up(cin, _LANE)
        xp = jnp.pad(x, ((0, 0), (1, 1), (1, 1), (0, cin_p - cin)))
        hs = oh + (2 // stride)
        ws = ow + (2 // stride)
        planes = []
        for a in range(stride):
            for b_ in range(stride):
                p_ = xp[:, a::stride, b_::stride, :]
                p_ = jnp.pad(p_, ((0, 0), (0, max(0, hs - p_.shape[1])),
                                  (0, max(0, ws - p_.shape[2])), (0, 0)))
                planes.append(p_[:, :hs, :ws, :])
        xph = jnp.concatenate(planes, axis=1)   # (n, s*s*hs, ws, cin_p) f32

        w1p = jnp.zeros((9, cin_p, cout_p), jnp.float32).at[:, :cin, :cout].set(
            w1.reshape(9, cin, cout)).astype(jnp.bfloat16)

        xph_spec = pl.BlockSpec((None, stride * stride * hs, ws, cin_p),
                                lambda i: (i, 0, 0, 0))
        w1_spec = pl.BlockSpec((9, cin_p, cout_p), lambda i: (0, 0, 0))

        if with_down:
            wdp = jnp.zeros((cin_p, cout_p), jnp.float32).at[:cin, :cout].set(
                wd.reshape(cin, cout)).astype(jnp.bfloat16)
            inputs = [xph, w1p, wdp]
            in_specs = [xph_spec, w1_spec,
                        pl.BlockSpec((cin_p, cout_p), lambda i: (0, 0))]
            out_specs = (per_img_rows, per_img_stat, per_img_stat,
                         per_img_rows, per_img_stat, per_img_stat)
            out_shapes = (img_bf16, stat_img, stat_img,
                          img_bf16, stat_img, stat_img)
        else:
            inputs = [xph, w1p]
            in_specs = [xph_spec, w1_spec]
            out_specs = (per_img_rows, per_img_stat, per_img_stat)
            out_shapes = (img_bf16, stat_img, stat_img)

        kern_a = functools.partial(_conv1_big_kernel, oh=oh, ow=ow,
                                   stride=stride, hs=hs, with_down=with_down)
        outs_a = pl.pallas_call(
            kern_a, grid=(n,),
            in_specs=in_specs, out_specs=out_specs, out_shape=out_shapes,
            compiler_params=cparams)(*inputs)

        if with_down:
            y1_raw, s1, q1, yd_raw, sd, qd = outs_a
        else:
            y1_raw, s1, q1 = outs_a

    sc1, bi1 = _fold_bn(jnp.sum(s1, axis=0), jnp.sum(q1, axis=0), count, g1p, b1p)

    # ------------------------------ pass B ---------------------------------- #
    w2p = jnp.zeros((9, cout_p, cout_p), jnp.float32).at[:, :cout, :cout].set(
        w2.reshape(9, cout, cout)).astype(jnp.bfloat16)

    kern_b = functools.partial(_conv2_kernel, oh=oh, ow=ow, cp=cout_p)
    y2_raw, s2, q2 = pl.pallas_call(
        kern_b, grid=(n,),
        in_specs=[per_img_rows, vec_spec, vec_spec,
                  pl.BlockSpec((9, cout_p, cout_p), lambda i: (0, 0, 0))],
        out_specs=(per_img_rows, per_img_stat, per_img_stat),
        out_shape=(img_bf16, stat_img, stat_img),
        scratch_shapes=[pltpu.VMEM((oh + 2, ow + 2, cout_p), jnp.float32)],
        compiler_params=cparams)(y1_raw, sc1, bi1, w2p)

    sc2, bi2 = _fold_bn(jnp.sum(s2, axis=0), jnp.sum(q2, axis=0), count, g2p, b2p)

    # ------------------------------ pass C ---------------------------------- #
    rows = n * m
    row_blk, r_pad = _plan_rows(rows)
    n_blk = r_pad // row_blk

    def _flat(a):   # (n, m, cout_p) -> (r_pad, cout_p)
        return jnp.pad(a.reshape(rows, cout_p), ((0, r_pad - rows), (0, 0)))

    flat_in_spec = pl.BlockSpec((row_blk, cout_p), lambda r: (r, 0))
    vecc_spec = pl.BlockSpec((1, cout_p), lambda r: (0, 0))

    inputs_c = [_flat(y2_raw), sc2, bi2]
    in_specs_c = [flat_in_spec, vecc_spec, vecc_spec]
    if res == 1:
        if downsample == 1:
            gdp, bdp = _pad_vec(gd), _pad_vec(bd)
            scd, bid = _fold_bn(jnp.sum(sd, axis=0), jnp.sum(qd, axis=0),
                                count, gdp, bdp)
            shortcut = yd_raw
        else:
            # Identity shortcut: only exact when stride == 1 and cin == cout.
            assert stride == 1 and cin == cout, \
                "identity shortcut needs stride=1 and cin==cout"
            xs = x[:, :oh, :ow, :]
            shortcut = jnp.pad(xs, ((0, 0), (0, 0), (0, 0),
                                    (0, cout_p - cin))).reshape(n, m, cout_p)
            shortcut = shortcut.astype(jnp.bfloat16)
            scd = jnp.ones((1, cout_p), jnp.float32)
            bid = jnp.zeros((1, cout_p), jnp.float32)
        inputs_c += [_flat(shortcut), scd, bid]
        in_specs_c += [flat_in_spec, vecc_spec, vecc_spec]

    kern_c = functools.partial(_finalize_kernel, res=res)
    out_flat = pl.pallas_call(
        kern_c, grid=(n_blk,),
        in_specs=in_specs_c,
        out_specs=pl.BlockSpec((row_blk, cout_p), lambda r: (r, 0)),
        out_shape=jax.ShapeDtypeStruct((r_pad, cout_p), jnp.float32),
        compiler_params=cparams)(*inputs_c)

    out = out_flat[:rows, :cout].reshape(n, oh, ow, cout)   # drop padding
    return jnp.transpose(out, (0, 3, 1, 2))                 # NHWC -> NCHW


# ------------------------------ reference ---------------------------------- #
def _conv(x, w, s, pad):
    return jax.lax.conv_general_dilated(
        x, w, window_strides=(s, s), padding=[(pad, pad), (pad, pad)],
        dimension_numbers=('NHWC', 'HWIO', 'NHWC'))


def _bn_ref(y, g, b):
    mean = jnp.mean(y, axis=(0, 1, 2), keepdims=True)
    var = jnp.mean(jnp.square(y - mean), axis=(0, 1, 2), keepdims=True)
    return (y - mean) * jax.lax.rsqrt(var + _EPS) * g + b


def _reference(x_nchw, params, *, stride, res, downsample):
    x = jnp.transpose(x_nchw, (0, 2, 3, 1)).astype(jnp.float32)
    w1, g1, b1, w2, g2, b2, wd, gd, bd = params
    out = jax.nn.relu(_bn_ref(_conv(x, w1, stride, 1), g1, b1))
    out = _bn_ref(_conv(out, w2, 1, 1), g2, b2)
    if res == 1:
        if downsample == 1:
            x = _bn_ref(_conv(x, wd, stride, 0), gd, bd)
        out = out + x
    return jnp.transpose(jax.nn.relu(out), (0, 3, 1, 2))


def init_params(key, cin, cout):
    ks = jax.random.split(key, 9)
    w1 = 0.2 * jax.random.normal(ks[0], (3, 3, cin, cout), jnp.float32)
    w2 = 0.2 * jax.random.normal(ks[1], (3, 3, cout, cout), jnp.float32)
    wd = 0.2 * jax.random.normal(ks[2], (1, 1, cin, cout), jnp.float32)
    g1 = 1.0 + 0.1 * jax.random.normal(ks[3], (cout,), jnp.float32)
    b1 = 0.1 * jax.random.normal(ks[4], (cout,), jnp.float32)
    g2 = 1.0 + 0.1 * jax.random.normal(ks[5], (cout,), jnp.float32)
    b2 = 0.1 * jax.random.normal(ks[6], (cout,), jnp.float32)
    gd = 1.0 + 0.1 * jax.random.normal(ks[7], (cout,), jnp.float32)
    bd = 0.1 * jax.random.normal(ks[8], (cout,), jnp.float32)
    return (w1, g1, b1, w2, g2, b2, wd, gd, bd)


if __name__ == "__main__":
    key = jax.random.PRNGKey(0)

    # Config 1/2: module-default tiny shapes (small-cin im2col path),
    # Res=0 and Res=1 (downsample + residual add).
    # Config 3: large cin exercises the phase-decomposed per-tap path.
    configs = [
        dict(cin=4, cout=8, hw=16, stride=2, res=0, downsample=1),
        dict(cin=4, cout=8, hw=16, stride=2, res=1, downsample=1),
        dict(cin=128, cout=8, hw=16, stride=2, res=0, downsample=1),
    ]

    for idx, cfg in enumerate(configs):
        kx, kp = jax.random.split(jax.random.fold_in(key, idx))
        x = jax.random.normal(kx, (2, cfg["cin"], cfg["hw"], cfg["hw"]),
                              jnp.float32)   # NCHW
        params = init_params(kp, cfg["cin"], cfg["cout"])
        out = basic_block_forward(x, params, stride=cfg["stride"],
                                  res=cfg["res"], downsample=cfg["downsample"])
        out = jax.block_until_ready(out)
        ref = _reference(x, params, stride=cfg["stride"], res=cfg["res"],
                         downsample=cfg["downsample"])
        # Tolerance reflects bf16 matmul operands / bf16 inter-pass
        # intermediates (BN statistics themselves stay f32).
        np.testing.assert_allclose(np.asarray(out), np.asarray(ref),
                                    atol=3e-2, rtol=3e-2)

    print("KERNEL_OK")
</pallas_src>

<mosaic_0001>
module attributes {stable_mosaic.version = 11 : i64} {
  func.func @_conv2_kernel(%arg0: i32, %arg1: memref<1x64x128xbf16, #tpu.memory_space<vmem>>, %arg2: memref<1x128xf32, #tpu.memory_space<vmem>>, %arg3: memref<1x128xf32, #tpu.memory_space<vmem>>, %arg4: memref<9x128x128xbf16, #tpu.memory_space<vmem>>, %arg5: memref<1x64x128xbf16, #tpu.memory_space<vmem>>, %arg6: memref<1x1x128xf32, #tpu.memory_space<vmem>>, %arg7: memref<1x1x128xf32, #tpu.memory_space<vmem>>, %arg8: memref<10x10x128xf32, #tpu.memory_space<vmem>>) attributes {dimension_semantics = [#tpu.dimension_semantics<parallel>], iteration_bounds = array<i64: 2>, scalar_prefetch = 0 : i64, scratch_operands = 1 : i64, tpu.core_type = #tpu.core_type<tc>, window_params = [{transform_indices = @transform_0, window_bounds = array<i64: 1, 64, 128>}, {pipeline_mode = #tpu.pipeline_mode<synchronous>, transform_indices = @transform_1, window_bounds = array<i64: 1, 128>}, {pipeline_mode = #tpu.pipeline_mode<synchronous>, transform_indices = @transform_2, window_bounds = array<i64: 1, 128>}, {pipeline_mode = #tpu.pipeline_mode<synchronous>, transform_indices = @transform_3, window_bounds = array<i64: 9, 128, 128>}, {transform_indices = @transform_4, window_bounds = array<i64: 1, 64, 128>}, {transform_indices = @transform_5, window_bounds = array<i64: 1, 1, 128>}, {transform_indices = @transform_6, window_bounds = array<i64: 1, 1, 128>}]} {
    %c0 = arith.constant 0 : index
    %c0_0 = arith.constant 0 : index
    %c0_1 = arith.constant 0 : index
    %0 = vector.load %arg1[%c0, %c0_0, %c0_1] : memref<1x64x128xbf16, #tpu.memory_space<vmem>>, vector<1x64x128xbf16>
    %1 = vector.shape_cast %0 : vector<1x64x128xbf16> to vector<64x128xbf16>
    %2 = arith.extf %1 : vector<64x128xbf16> to vector<64x128xf32>
    %c0_2 = arith.constant 0 : index
    %c0_3 = arith.constant 0 : index
    %3 = vector.load %arg2[%c0_2, %c0_3] : memref<1x128xf32, #tpu.memory_space<vmem>>, vector<1x128xf32>
    %4 = vector.broadcast %3 : vector<1x128xf32> to vector<64x128xf32>
    %5 = arith.mulf %2, %4 : vector<64x128xf32>
    %c0_4 = arith.constant 0 : index
    %c0_5 = arith.constant 0 : index
    %6 = vector.load %arg3[%c0_4, %c0_5] : memref<1x128xf32, #tpu.memory_space<vmem>>, vector<1x128xf32>
    %7 = vector.broadcast %6 : vector<1x128xf32> to vector<64x128xf32>
    %8 = arith.addf %5, %7 : vector<64x128xf32>
    %cst = arith.constant 0.000000e+00 : f32
    %9 = vector.broadcast %cst : f32 to vector<64x128xf32>
    %10 = arith.maximumf %8, %9 : vector<64x128xf32>
    %cst_6 = arith.constant 0.000000e+00 : f32
    %11 = vector.broadcast %cst_6 : f32 to vector<1x10x128xf32>
    %cst_7 = arith.constant 0.000000e+00 : f32
    %12 = vector.broadcast %cst_7 : f32 to vector<8x1x128xf32>
    %c0_8 = arith.constant 0 : index
    %c0_9 = arith.constant 0 : index
    %c0_10 = arith.constant 0 : index
    %13 = vector.load %arg8[%c0_8, %c0_9, %c0_10] : memref<10x10x128xf32, #tpu.memory_space<vmem>>, vector<1x10x128xf32>
    tpu.vector_store %arg8[%c0_8, %c0_9, %c0_10], %11 {strides = array<i32>} : memref<10x10x128xf32, #tpu.memory_space<vmem>>, vector<1x10x128xf32>,
    %c9 = arith.constant 9 : index
    %c0_11 = arith.constant 0 : index
    %c0_12 = arith.constant 0 : index
    %14 = vector.load %arg8[%c9, %c0_11, %c0_12] : memref<10x10x128xf32, #tpu.memory_space<vmem>>, vector<1x10x128xf32>
    tpu.vector_store %arg8[%c9, %c0_11, %c0_12], %11 {strides = array<i32>} : memref<10x10x128xf32, #tpu.memory_space<vmem>>, vector<1x10x128xf32>,
    %c1 = arith.constant 1 : index
    %c0_13 = arith.constant 0 : index
    %c0_14 = arith.constant 0 : index
    %15 = vector.load %arg8[%c1, %c0_13, %c0_14] : memref<10x10x128xf32, #tpu.memory_space<vmem>>, vector<8x1x128xf32>
    tpu.vector_store %arg8[%c1, %c0_13, %c0_14], %12 {strides = array<i32>} : memref<10x10x128xf32, #tpu.memory_space<vmem>>, vector<8x1x128xf32>,
    %c1_15 = arith.constant 1 : index
    %c9_16 = arith.constant 9 : index
    %c0_17 = arith.constant 0 : index
    %16 = vector.load %arg8[%c1_15, %c9_16, %c0_17] : memref<10x10x128xf32, #tpu.memory_space<vmem>>, vector<8x1x128xf32>
    tpu.vector_store %arg8[%c1_15, %c9_16, %c0_17], %12 {strides = array<i32>} : memref<10x10x128xf32, #tpu.memory_space<vmem>>, vector<8x1x128xf32>,
    %17 = vector.shape_cast %10 : vector<64x128xf32> to vector<8x8x128xf32>
    %c1_18 = arith.constant 1 : index
    %c1_19 = arith.constant 1 : index
    %c0_20 = arith.constant 0 : index
    %18 = vector.load %arg8[%c1_18, %c1_19, %c0_20] : memref<10x10x128xf32, #tpu.memory_space<vmem>>, vector<8x8x128xf32>
    tpu.vector_store %arg8[%c1_18, %c1_19, %c0_20], %17 {strides = array<i32>} : memref<10x10x128xf32, #tpu.memory_space<vmem>>, vector<8x8x128xf32>,
    %c0_21 = arith.constant 0 : index
    %c0_22 = arith.constant 0 : index
    %c0_23 = arith.constant 0 : index
    %19 = vector.load %arg8[%c0_21, %c0_22, %c0_23] : memref<10x10x128xf32, #tpu.memory_space<vmem>>, vector<8x8x128xf32>
    %20 = vector.shape_cast %19 : vector<8x8x128xf32> to vector<64x128xf32>
    %21 = arith.truncf %20 : vector<64x128xf32> to vector<64x128xbf16>
    %c0_24 = arith.constant 0 : index
    %c0_25 = arith.constant 0 : index
    %c0_26 = arith.constant 0 : index
    %22 = vector.load %arg4[%c0_24, %c0_25, %c0_26] : memref<9x128x128xbf16, #tpu.memory_space<vmem>>, vector<1x128x128xbf16>
    %23 = vector.shape_cast %22 : vector<1x128x128xbf16> to vector<128x128xbf16>
    %cst_27 = arith.constant dense<0.000000e+00> : vector<64x128xf32>
    %24 = tpu.matmul %21, %23, %cst_27 {dimension_numbers = #tpu.dot_dimension_numbers<[1], [0], [0], [1], [0, 0, 1, 1], [], []>} : vector<64x128xbf16>, vector<128x128xbf16>, vector<64x128xf32> -> vector<64x128xf32>
    %c0_28 = arith.constant 0 : index
    %c1_29 = arith.constant 1 : index
    %c0_30 = arith.constant 0 : index
    %25 = vector.load %arg8[%c0_28, %c1_29, %c0_30] : memref<10x10x128xf32, #tpu.memory_space<vmem>>, vector<8x8x128xf32>
    %26 = vector.shape_cast %25 : vector<8x8x128xf32> to vector<64x128xf32>
    %27 = arith.truncf %26 : vector<64x128xf32> to vector<64x128xbf16>
    %c1_31 = arith.constant 1 : index
    %c0_32 = arith.constant 0 : index
    %c0_33 = arith.constant 0 : index
    %28 = vector.load %arg4[%c1_31, %c0_32, %c0_33] : memref<9x128x128xbf16, #tpu.memory_space<vmem>>, vector<1x128x128xbf16>
    %29 = vector.shape_cast %28 : vector<1x128x128xbf16> to vector<128x128xbf16>
    %cst_34 = arith.constant dense<0.000000e+00> : vector<64x128xf32>
    %30 = tpu.matmul %27, %29, %cst_34 {dimension_numbers = #tpu.dot_dimension_numbers<[1], [0], [0], [1], [0, 0, 1, 1], [], []>} : vector<64x128xbf16>, vector<128x128xbf16>, vector<64x128xf32> -> vector<64x128xf32>
    %31 = arith.addf %24, %30 : vector<64x128xf32>
    %c0_35 = arith.constant 0 : index
    %c2 = arith.constant 2 : index
    %c0_36 = arith.constant 0 : index
    %32 = vector.load %arg8[%c0_35, %c2, %c0_36] : memref<10x10x128xf32, #tpu.memory_space<vmem>>, vector<8x8x128xf32>
    %33 = vector.shape_cast %32 : vector<8x8x128xf32> to vector<64x128xf32>
    %34 = arith.truncf %33 : vector<64x128xf32> to vector<64x128xbf16>
    %c2_37 = arith.constant 2 : index
    %c0_38 = arith.constant 0 : index
    %c0_39 = arith.constant 0 : index
    %35 = vector.load %arg4[%c2_37, %c0_38, %c0_39] : memref<9x128x128xbf16, #tpu.memory_space<vmem>>, vector<1x128x128xbf16>
    %36 = vector.shape_cast %35 : vector<1x128x128xbf16> to vector<128x128xbf16>
    %cst_40 = arith.constant dense<0.000000e+00> : vector<64x128xf32>
    %37 = tpu.matmul %34, %36, %cst_40 {dimension_numbers = #tpu.dot_dimension_numbers<[1], [0], [0], [1], [0, 0, 1, 1], [], []>} : vector<64x128xbf16>, vector<128x128xbf16>, vector<64x128xf32> -> vector<64x128xf32>
    %38 = arith.addf %31, %37 : vector<64x128xf32>
    %c1_41 = arith.constant 1 : index
    %c0_42 = arith.constant 0 : index
    %c0_43 = arith.constant 0 : index
    %39 = vector.load %arg8[%c1_41, %c0_42, %c0_43] : memref<10x10x128xf32, #tpu.memory_space<vmem>>, vector<8x8x128xf32>
    %40 = vector.shape_cast %39 : vector<8x8x128xf32> to vector<64x128xf32>
    %41 = arith.truncf %40 : vector<64x128xf32> to vector<64x128xbf16>
    %c3 = arith.constant 3 : index
    %c0_44 = arith.constant 0 : index
    %c0_45 = arith.constant 0 : index
    %42 = vector.load %arg4[%c3, %c0_44, %c0_45] : memref<9x128x128xbf16, #tpu.memory_space<vmem>>, vector<1x128x128xbf16>
    %43 = vector.shape_cast %42 : vector<1x128x128xbf16> to vector<128x128xbf16>
    %cst_46 = arith.constant dense<0.000000e+00> : vector<64x128xf32>
    %44 = tpu.matmul %41, %43, %cst_46 {dimension_numbers = #tpu.dot_dimension_numbers<[1], [0], [0], [1], [0, 0, 1, 1], [], []>} : vector<64x128xbf16>, vector<128x128xbf16>, vector<64x128xf32> -> vector<64x128xf32>
    %45 = arith.addf %38, %44 : vector<64x128xf32>
    %c1_47 = arith.constant 1 : index
    %c1_48 = arith.constant 1 : index
    %c0_49 = arith.constant 0 : index
    %46 = vector.load %arg8[%c1_47, %c1_48, %c0_49] : memref<10x10x128xf32, #tpu.memory_space<vmem>>, vector<8x8x128xf32>
    %47 = vector.shape_cast %46 : vector<8x8x128xf32> to vector<64x128xf32>
    %48 = arith.truncf %47 : vector<64x128xf32> to vector<64x128xbf16>
    %c4 = arith.constant 4 : index
    %c0_50 = arith.constant 0 : index
    %c0_51 = arith.constant 0 : index
    %49 = vector.load %arg4[%c4, %c0_50, %c0_51] : memref<9x128x128xbf16, #tpu.memory_space<vmem>>, vector<1x128x128xbf16>
    %50 = vector.shape_cast %49 : vector<1x128x128xbf16> to vector<128x128xbf16>
    %cst_52 = arith.constant dense<0.000000e+00> : vector<64x128xf32>
    %51 = tpu.matmul %48, %50, %cst_52 {dimension_numbers = #tpu.dot_dimension_numbers<[1], [0], [0], [1], [0, 0, 1, 1], [], []>} : vector<64x128xbf16>, vector<128x128xbf16>, vector<64x128xf32> -> vector<64x128xf32>
    %52 = arith.addf %45, %51 : vector<64x128xf32>
    %c1_53 = arith.constant 1 : index
    %c2_54 = arith.constant 2 : index
    %c0_55 = arith.constant 0 : index
    %53 = vector.load %arg8[%c1_53, %c2_54, %c0_55] : memref<10x10x128xf32, #tpu.memory_space<vmem>>, vector<8x8x128xf32>
    %54 = vector.shape_cast %53 : vector<8x8x128xf32> to vector<64x128xf32>
    %55 = arith.truncf %54 : vector<64x128xf32> to vector<64x128xbf16>
    %c5 = arith.constant 5 : index
    %c0_56 = arith.constant 0 : index
    %c0_57 = arith.constant 0 : index
    %56 = vector.load %arg4[%c5, %c0_56, %c0_57] : memref<9x128x128xbf16, #tpu.memory_space<vmem>>, vector<1x128x128xbf16>
    %57 = vector.shape_cast %56 : vector<1x128x128xbf16> to vector<128x128xbf16>
    %cst_58 = arith.constant dense<0.000000e+00> : vector<64x128xf32>
    %58 = tpu.matmul %55, %57, %cst_58 {dimension_numbers = #tpu.dot_dimension_numbers<[1], [0], [0], [1], [0, 0, 1, 1], [], []>} : vector<64x128xbf16>, vector<128x128xbf16>, vector<64x128xf32> -> vector<64x128xf32>
    %59 = arith.addf %52, %58 : vector<64x128xf32>
    %c2_59 = arith.constant 2 : index
    %c0_60 = arith.constant 0 : index
    %c0_61 = arith.constant 0 : index
    %60 = vector.load %arg8[%c2_59, %c0_60, %c0_61] : memref<10x10x128xf32, #tpu.memory_space<vmem>>, vector<8x8x128xf32>
    %61 = vector.shape_cast %60 : vector<8x8x128xf32> to vector<64x128xf32>
    %62 = arith.truncf %61 : vector<64x128xf32> to vector<64x128xbf16>
    %c6 = arith.constant 6 : index
    %c0_62 = arith.constant 0 : index
    %c0_63 = arith.constant 0 : index
    %63 = vector.load %arg4[%c6, %c0_62, %c0_63] : memref<9x128x128xbf16, #tpu.memory_space<vmem>>, vector<1x128x128xbf16>
    %64 = vector.shape_cast %63 : vector<1x128x128xbf16> to vector<128x128xbf16>
    %cst_64 = arith.constant dense<0.000000e+00> : vector<64x128xf32>
    %65 = tpu.matmul %62, %64, %cst_64 {dimension_numbers = #tpu.dot_dimension_numbers<[1], [0], [0], [1], [0, 0, 1, 1], [], []>} : vector<64x128xbf16>, vector<128x128xbf16>, vector<64x128xf32> -> vector<64x128xf32>
    %66 = arith.addf %59, %65 : vector<64x128xf32>
    %c2_65 = arith.constant 2 : index
    %c1_66 = arith.constant 1 : index
    %c0_67 = arith.constant 0 : index
    %67 = vector.load %arg8[%c2_65, %c1_66, %c0_67] : memref<10x10x128xf32, #tpu.memory_space<vmem>>, vector<8x8x128xf32>
    %68 = vector.shape_cast %67 : vector<8x8x128xf32> to vector<64x128xf32>
    %69 = arith.truncf %68 : vector<64x128xf32> to vector<64x128xbf16>
    %c7 = arith.constant 7 : index
    %c0_68 = arith.constant 0 : index
    %c0_69 = arith.constant 0 : index
    %70 = vector.load %arg4[%c7, %c0_68, %c0_69] : memref<9x128x128xbf16, #tpu.memory_space<vmem>>, vector<1x128x128xbf16>
    %71 = vector.shape_cast %70 : vector<1x128x128xbf16> to vector<128x128xbf16>
    %cst_70 = arith.constant dense<0.000000e+00> : vector<64x128xf32>
    %72 = tpu.matmul %69, %71, %cst_70 {dimension_numbers = #tpu.dot_dimension_numbers<[1], [0], [0], [1], [0, 0, 1, 1], [], []>} : vector<64x128xbf16>, vector<128x128xbf16>, vector<64x128xf32> -> vector<64x128xf32>
    %73 = arith.addf %66, %72 : vector<64x128xf32>
    %c2_71 = arith.constant 2 : index
    %c2_72 = arith.constant 2 : index
    %c0_73 = arith.constant 0 : index
    %74 = vector.load %arg8[%c2_71, %c2_72, %c0_73] : memref<10x10x128xf32, #tpu.memory_space<vmem>>, vector<8x8x128xf32>
    %75 = vector.shape_cast %74 : vector<8x8x128xf32> to vector<64x128xf32>
    %76 = arith.truncf %75 : vector<64x128xf32> to vector<64x128xbf16>
    %c8 = arith.constant 8 : index
    %c0_74 = arith.constant 0 : index
    %c0_75 = arith.constant 0 : index
    %77 = vector.load %arg4[%c8, %c0_74, %c0_75] : memref<9x128x128xbf16, #tpu.memory_space<vmem>>, vector<1x128x128xbf16>
    %78 = vector.shape_cast %77 : vector<1x128x128xbf16> to vector<128x128xbf16>
    %cst_76 = arith.constant dense<0.000000e+00> : vector<64x128xf32>
    %79 = tpu.matmul %76, %78, %cst_76 {dimension_numbers = #tpu.dot_dimension_numbers<[1], [0], [0], [1], [0, 0, 1, 1], [], []>} : vector<64x128xbf16>, vector<128x128xbf16>, vector<64x128xf32> -> vector<64x128xf32>
    %80 = arith.addf %73, %79 : vector<64x128xf32>
    %81 = arith.truncf %80 : vector<64x128xf32> to vector<64x128xbf16>
    %c0_77 = arith.constant 0 : index
    %c0_78 = arith.constant 0 : index
    %c0_79 = arith.constant 0 : index
    %82 = vector.load %arg5[%c0_77, %c0_78, %c0_79] : memref<1x64x128xbf16, #tpu.memory_space<vmem>>, vector<1x64x128xbf16>
    %83 = vector.shape_cast %82 : vector<1x64x128xbf16> to vector<64x128xbf16>
    %84 = vector.shape_cast %81 : vector<64x128xbf16> to vector<1x64x128xbf16>
    tpu.vector_store %arg5[%c0_77, %c0_78, %c0_79], %84 {strides = array<i32>} : memref<1x64x128xbf16, #tpu.memory_space<vmem>>, vector<1x64x128xbf16>,
    %cst_80 = arith.constant dense<0.000000e+00> : vector<128xf32>
    %85 = vector.multi_reduction <add>, %80, %cst_80 [0] : vector<64x128xf32> to vector<128xf32>
    %86 = vector.shape_cast %85 : vector<128xf32> to vector<1x128xf32>
    %c0_81 = arith.constant 0 : index
    %c0_82 = arith.constant 0 : index
    %c0_83 = arith.constant 0 : index
    %87 = vector.load %arg6[%c0_81, %c0_82, %c0_83] : memref<1x1x128xf32, #tpu.memory_space<vmem>>, vector<1x1x128xf32>
    %88 = vector.shape_cast %87 : vector<1x1x128xf32> to vector<1x128xf32>
    %89 = vector.shape_cast %86 : vector<1x128xf32> to vector<1x1x128xf32>
    tpu.vector_store %arg6[%c0_81, %c0_82, %c0_83], %89 {strides = array<i32>} : memref<1x1x128xf32, #tpu.memory_space<vmem>>, vector<1x1x128xf32>,
    %90 = arith.mulf %80, %80 : vector<64x128xf32>
    %cst_84 = arith.constant dense<0.000000e+00> : vector<128xf32>
    %91 = vector.multi_reduction <add>, %90, %cst_84 [0] : vector<64x128xf32> to vector<128xf32>
    %92 = vector.shape_cast %91 : vector<128xf32> to vector<1x128xf32>
    %c0_85 = arith.constant 0 : index
    %c0_86 = arith.constant 0 : index
    %c0_87 = arith.constant 0 : index
    %93 = vector.load %arg7[%c0_85, %c0_86, %c0_87] : memref<1x1x128xf32, #tpu.memory_space<vmem>>, vector<1x1x128xf32>
    %94 = vector.shape_cast %93 : vector<1x1x128xf32> to vector<1x128xf32>
    %95 = vector.shape_cast %92 : vector<1x128xf32> to vector<1x1x128xf32>
    tpu.vector_store %arg7[%c0_85, %c0_86, %c0_87], %95 {strides = array<i32>} : memref<1x1x128xf32, #tpu.memory_space<vmem>>, vector<1x1x128xf32>,
    return
  }
  func.func @transform_0(%arg0: i32) -> (i32, i32, i32) {
    %c0_i32 = arith.constant 0 : i32
    %c0_i32_0 = arith.constant 0 : i32
    %c0_i32_1 = arith.constant 0 : i32
    return %arg0, %c0_i32, %c0_i32_0 : i32, i32, i32
  }
  func.func @transform_1(%arg0: i32) -> (i32, i32) {
    %c0_i32 = arith.constant 0 : i32
    %c0_i32_0 = arith.constant 0 : i32
    %c0_i32_1 = arith.constant 0 : i32
    return %c0_i32, %c0_i32_0 : i32, i32
  }
  func.func @transform_2(%arg0: i32) -> (i32, i32) {
    %c0_i32 = arith.constant 0 : i32
    %c0_i32_0 = arith.constant 0 : i32
    %c0_i32_1 = arith.constant 0 : i32
    return %c0_i32, %c0_i32_0 : i32, i32
  }
  func.func @transform_3(%arg0: i32) -> (i32, i32, i32) {
    %c0_i32 = arith.constant 0 : i32
    %c0_i32_0 = arith.constant 0 : i32
    %c0_i32_1 = arith.constant 0 : i32
    %c0_i32_2 = arith.constant 0 : i32
    return %c0_i32, %c0_i32_0, %c0_i32_1 : i32, i32, i32
  }
  func.func @transform_4(%arg0: i32) -> (i32, i32, i32) {
    %c0_i32 = arith.constant 0 : i32
    %c0_i32_0 = arith.constant 0 : i32
    %c0_i32_1 = arith.constant 0 : i32
    return %arg0, %c0_i32, %c0_i32_0 : i32, i32, i32
  }
  func.func @transform_5(%arg0: i32) -> (i32, i32, i32) {
    %c0_i32 = arith.constant 0 : i32
    %c0_i32_0 = arith.constant 0 : i32
    %c0_i32_1 = arith.constant 0 : i32
    return %arg0, %c0_i32, %c0_i32_0 : i32, i32, i32
  }
  func.func @transform_6(%arg0: i32) -> (i32, i32, i32) {
    %c0_i32 = arith.constant 0 : i32
    %c0_i32_0 = arith.constant 0 : i32
    %c0_i32_1 = arith.constant 0 : i32
    return %arg0, %c0_i32, %c0_i32_0 : i32, i32, i32
  }
}

module attributes {stable_mosaic.version = 11 : i64} {
  func.func @_conv1_small_kernel(%arg0: i32, %arg1: memref<128x128xbf16, #tpu.memory_space<vmem>>, %arg2: memref<128x128xbf16, #tpu.memory_space<vmem>>, %arg3: memref<128x128xbf16, #tpu.memory_space<vmem>>, %arg4: memref<1x1x128xf32, #tpu.memory_space<vmem>>, %arg5: memref<1x1x128xf32, #tpu.memory_space<vmem>>) attributes {dimension_semantics = [#tpu.dimension_semantics<parallel>], iteration_bounds = array<i64: 1>, scalar_prefetch = 0 : i64, scratch_operands = 0 : i64, tpu.core_type = #tpu.core_type<tc>, window_params = [{transform_indices = @transform_0, window_bounds = array<i64: 128, 128>}, {pipeline_mode = #tpu.pipeline_mode<synchronous>, transform_indices = @transform_1, window_bounds = array<i64: 128, 128>}, {transform_indices = @transform_2, window_bounds = array<i64: 128, 128>}, {transform_indices = @transform_3, window_bounds = array<i64: 1, 1, 128>}, {transform_indices = @transform_4, window_bounds = array<i64: 1, 1, 128>}]} {
    %c0 = arith.constant 0 : index
    %c0_0 = arith.constant 0 : index
    %0 = vector.load %arg1[%c0, %c0_0] : memref<128x128xbf16, #tpu.memory_space<vmem>>, vector<128x128xbf16>
    %c0_1 = arith.constant 0 : index
    %c0_2 = arith.constant 0 : index
    %1 = vector.load %arg2[%c0_1, %c0_2] : memref<128x128xbf16, #tpu.memory_space<vmem>>, vector<128x128xbf16>
    %cst = arith.constant dense<0.000000e+00> : vector<128x128xf32>
    %2 = tpu.matmul %0, %1, %cst {dimension_numbers = #tpu.dot_dimension_numbers<[1], [0], [0], [1], [0, 0, 1, 1], [], []>} : vector<128x128xbf16>, vector<128x128xbf16>, vector<128x128xf32> -> vector<128x128xf32>
    %3 = arith.truncf %2 : vector<128x128xf32> to vector<128x128xbf16>
    %c0_3 = arith.constant 0 : index
    %c0_4 = arith.constant 0 : index
    %4 = vector.load %arg3[%c0_3, %c0_4] : memref<128x128xbf16, #tpu.memory_space<vmem>>, vector<128x128xbf16>
    tpu.vector_store %arg3[%c0_3, %c0_4], %3 {strides = array<i32>} : memref<128x128xbf16, #tpu.memory_space<vmem>>, vector<128x128xbf16>,
    %cst_5 = arith.constant dense<0.000000e+00> : vector<128xf32>
    %5 = vector.multi_reduction <add>, %2, %cst_5 [0] : vector<128x128xf32> to vector<128xf32>
    %6 = vector.shape_cast %5 : vector<128xf32> to vector<1x128xf32>
    %c0_6 = arith.constant 0 : index
    %c0_7 = arith.constant 0 : index
    %c0_8 = arith.constant 0 : index
    %7 = vector.load %arg4[%c0_6, %c0_7, %c0_8] : memref<1x1x128xf32, #tpu.memory_space<vmem>>, vector<1x1x128xf32>
    %8 = vector.shape_cast %7 : vector<1x1x128xf32> to vector<1x128xf32>
    %9 = vector.shape_cast %6 : vector<1x128xf32> to vector<1x1x128xf32>
    tpu.vector_store %arg4[%c0_6, %c0_7, %c0_8], %9 {strides = array<i32>} : memref<1x1x128xf32, #tpu.memory_space<vmem>>, vector<1x1x128xf32>,
    %10 = arith.mulf %2, %2 : vector<128x128xf32>
    %cst_9 = arith.constant dense<0.000000e+00> : vector<128xf32>
    %11 = vector.multi_reduction <add>, %10, %cst_9 [0] : vector<128x128xf32> to vector<128xf32>
    %12 = vector.shape_cast %11 : vector<128xf32> to vector<1x128xf32>
    %c0_10 = arith.constant 0 : index
    %c0_11 = arith.constant 0 : index
    %c0_12 = arith.constant 0 : index
    %13 = vector.load %arg5[%c0_10, %c0_11, %c0_12] : memref<1x1x128xf32, #tpu.memory_space<vmem>>, vector<1x1x128xf32>
    %14 = vector.shape_cast %13 : vector<1x1x128xf32> to vector<1x128xf32>
    %15 = vector.shape_cast %12 : vector<1x128xf32> to vector<1x1x128xf32>
    tpu.vector_store %arg5[%c0_10, %c0_11, %c0_12], %15 {strides = array<i32>} : memref<1x1x128xf32, #tpu.memory_space<vmem>>, vector<1x1x128xf32>,
    return
  }
  func.func @transform_0(%arg0: i32) -> (i32, i32) {
    %c0_i32 = arith.constant 0 : i32
    %c0_i32_0 = arith.constant 0 : i32
    return %arg0, %c0_i32 : i32, i32
  }
  func.func @transform_1(%arg0: i32) -> (i32, i32) {
    %c0_i32 = arith.constant 0 : i32
    %c0_i32_0 = arith.constant 0 : i32
    %c0_i32_1 = arith.constant 0 : i32
    return %c0_i32, %c0_i32_0 : i32, i32
  }
  func.func @transform_2(%arg0: i32) -> (i32, i32) {
    %c0_i32 = arith.constant 0 : i32
    %c0_i32_0 = arith.constant 0 : i32
    return %arg0, %c0_i32 : i32, i32
  }
  func.func @transform_3(%arg0: i32) -> (i32, i32, i32) {
    %c0_i32 = arith.constant 0 : i32
    %c0_i32_0 = arith.constant 0 : i32
    %c0_i32_1 = arith.constant 0 : i32
    return %arg0, %c0_i32, %c0_i32_0 : i32, i32, i32
  }
  func.func @transform_4(%arg0: i32) -> (i32, i32, i32) {
    %c0_i32 = arith.constant 0 : i32
    %c0_i32_0 = arith.constant 0 : i32
    %c0_i32_1 = arith.constant 0 : i32
    return %arg0, %c0_i32, %c0_i32_0 : i32, i32, i32
  }
}

module attributes {stable_mosaic.version = 11 : i64} {
  func.func @_finalize_kernel(%arg0: i32, %arg1: memref<128x128xbf16, #tpu.memory_space<vmem>>, %arg2: memref<1x128xf32, #tpu.memory_space<vmem>>, %arg3: memref<1x128xf32, #tpu.memory_space<vmem>>, %arg4: memref<128x128xf32, #tpu.memory_space<vmem>>) attributes {dimension_semantics = [#tpu.dimension_semantics<parallel>], iteration_bounds = array<i64: 1>, scalar_prefetch = 0 : i64, scratch_operands = 0 : i64, tpu.core_type = #tpu.core_type<tc>, window_params = [{transform_indices = @transform_0, window_bounds = array<i64: 128, 128>}, {pipeline_mode = #tpu.pipeline_mode<synchronous>, transform_indices = @transform_1, window_bounds = array<i64: 1, 128>}, {pipeline_mode = #tpu.pipeline_mode<synchronous>, transform_indices = @transform_2, window_bounds = array<i64: 1, 128>}, {transform_indices = @transform_3, window_bounds = array<i64: 128, 128>}]} {
    %c0 = arith.constant 0 : index
    %c0_0 = arith.constant 0 : index
    %0 = vector.load %arg1[%c0, %c0_0] : memref<128x128xbf16, #tpu.memory_space<vmem>>, vector<128x128xbf16>
    %1 = arith.extf %0 : vector<128x128xbf16> to vector<128x128xf32>
    %c0_1 = arith.constant 0 : index
    %c0_2 = arith.constant 0 : index
    %2 = vector.load %arg2[%c0_1, %c0_2] : memref<1x128xf32, #tpu.memory_space<vmem>>, vector<1x128xf32>
    %3 = vector.broadcast %2 : vector<1x128xf32> to vector<128x128xf32>
    %4 = arith.mulf %1, %3 : vector<128x128xf32>
    %c0_3 = arith.constant 0 : index
    %c0_4 = arith.constant 0 : index
    %5 = vector.load %arg3[%c0_3, %c0_4] : memref<1x128xf32, #tpu.memory_space<vmem>>, vector<1x128xf32>
    %6 = vector.broadcast %5 : vector<1x128xf32> to vector<128x128xf32>
    %7 = arith.addf %4, %6 : vector<128x128xf32>
    %cst = arith.constant 0.000000e+00 : f32
    %8 = vector.broadcast %cst : f32 to vector<128x128xf32>
    %9 = arith.maximumf %7, %8 : vector<128x128xf32>
    %c0_5 = arith.constant 0 : index
    %c0_6 = arith.constant 0 : index
    %10 = vector.load %arg4[%c0_5, %c0_6] : memref<128x128xf32, #tpu.memory_space<vmem>>, vector<128x128xf32>
    tpu.vector_store %arg4[%c0_5, %c0_6], %9 {strides = array<i32>} : memref<128x128xf32, #tpu.memory_space<vmem>>, vector<128x128xf32>,
    return
  }
  func.func @transform_0(%arg0: i32) -> (i32, i32) {
    %c0_i32 = arith.constant 0 : i32
    %c0_i32_0 = arith.constant 0 : i32
    return %arg0, %c0_i32 : i32, i32
  }
  func.func @transform_1(%arg0: i32) -> (i32, i32) {
    %c0_i32 = arith.constant 0 : i32
    %c0_i32_0 = arith.constant 0 : i32
    %c0_i32_1 = arith.constant 0 : i32
    return %c0_i32, %c0_i32_0 : i32, i32
  }
  func.func @transform_2(%arg0: i32) -> (i32, i32) {
    %c0_i32 = arith.constant 0 : i32
    %c0_i32_0 = arith.constant 0 : i32
    %c0_i32_1 = arith.constant 0 : i32
    return %c0_i32, %c0_i32_0 : i32, i32
  }
  func.func @transform_3(%arg0: i32) -> (i32, i32) {
    %c0_i32 = arith.constant 0 : i32
    %c0_i32_0 = arith.constant 0 : i32
    return %arg0, %c0_i32 : i32, i32
  }
}

</mosaic_0001>

<llo_original>
// kernel: basic_block_forward.3
$region0: #{basic_block_forward.3}
  #allocation0 [shape = 'u32[]', space=smem, size = 0x4, offset = 0x4, fixed_abs, tag = 'smem constant byte address 0x4 - core index']
  #allocation1 [shape = 'u32[144,128]{1,0:T(1,128)}', space=vmem, size = 0x12000, scoped, tag = 'internal scratch']
  %s0 = inlined_call_operand.vmem [shape: bf16[128,128], index: 0, kind: input, shape index: {}]
  %s1 = inlined_call_operand.vmem [shape: bf16[128,128], index: 1, kind: input, shape index: {}]
  %s2 = inlined_call_operand.vmem [shape: bf16[128,128], index: 2, kind: output, shape index: {0}]
  %s3 = inlined_call_operand.vmem [shape: f32[1,1,128], index: 3, kind: output, shape index: {1}]
  %s4 = inlined_call_operand.vmem [shape: f32[1,1,128], index: 4, kind: output, shape index: {2}]
  %5 = xla_tuple %s2, %s3, %s4
  %s6 = sld [smem:[#allocation0]]
  $region34: #{basic_block_forward.3} parent=0
    _
  %s8 = ssub.s32 1, %s6
  %s9 = scalar_select 0, %s8, %s6
  // Predicated region
  $region2: #{basic_block_forward.3} parent=0 // pred_check
    _
  $region3: #{basic_block_forward.3} parent=0 // pred_check_branch
    %11 = sbr.rel (0) target = $region5
  $region4: #{basic_block_forward.3} parent=0 // pred_region
    _
  $region5: #{basic_block_forward.3} parent=0 // pred_fallthru
    _
  // Predicated region
  $region6: #{basic_block_forward.3} parent=0 // pred_check
    _
  $region7: #{basic_block_forward.3} parent=0 // pred_check_branch
    %13 = sbr.rel (0) target = $region9
  $region8: #{basic_block_forward.3} parent=0 // pred_region
    _
  $region9: #{basic_block_forward.3} parent=0 // pred_fallthru
    _
  %v15 = vld [vmem:[%s0] sm:$0xf]
  %v16 = vld [vmem:[%s0 + $0x4] sm:$0xf]
  %v17 = vld [vmem:[%s0 + $0x8] sm:$0xf]
  %v18 = vld [vmem:[%s0 + $0xc] sm:$0xf]
  %v19 = vld [vmem:[%s0 + $0x10] sm:$0xf]
  %v20 = vld [vmem:[%s0 + $0x14] sm:$0xf]
  %v21 = vld [vmem:[%s0 + $0x18] sm:$0xf]
  %v22 = vld [vmem:[%s0 + $0x1c] sm:$0xf]
  %v23 = vld [vmem:[%s0 + $0x20] sm:$0xf]
  %v24 = vld [vmem:[%s0 + $0x24] sm:$0xf]
  %v25 = vld [vmem:[%s0 + $0x28] sm:$0xf]
  %v26 = vld [vmem:[%s0 + $0x2c] sm:$0xf]
  %v27 = vld [vmem:[%s0 + $0x30] sm:$0xf]
  %v28 = vld [vmem:[%s0 + $0x34] sm:$0xf]
  %v29 = vld [vmem:[%s0 + $0x38] sm:$0xf]
  %v30 = vld [vmem:[%s0 + $0x3c] sm:$0xf]
  %v31 = vld [vmem:[%s1] sm:$0xf]
  %v32 = vld [vmem:[%s1 + $0x4] sm:$0xf]
  %v33 = vld [vmem:[%s1 + $0x8] sm:$0xf]
  %v34 = vld [vmem:[%s1 + $0xc] sm:$0xf]
  %v35 = vld [vmem:[%s1 + $0x10] sm:$0xf]
  %v36 = vld [vmem:[%s1 + $0x14] sm:$0xf]
  %v37 = vld [vmem:[%s1 + $0x18] sm:$0xf]
  %v38 = vld [vmem:[%s1 + $0x1c] sm:$0xf]
  %v39 = vld [vmem:[%s1 + $0x20] sm:$0xf]
  %v40 = vld [vmem:[%s1 + $0x24] sm:$0xf]
  %v41 = vld [vmem:[%s1 + $0x28] sm:$0xf]
  %v42 = vld [vmem:[%s1 + $0x2c] sm:$0xf]
  %v43 = vld [vmem:[%s1 + $0x30] sm:$0xf]
  %v44 = vld [vmem:[%s1 + $0x34] sm:$0xf]
  %v45 = vld [vmem:[%s1 + $0x38] sm:$0xf]
  %v46 = vld [vmem:[%s1 + $0x3c] sm:$0xf]
  %v63 = vunpack.c.l.b16 %v15
  %v64 = vunpack.c.l.b16 %v16
  %v65 = vunpack.c.l.b16 %v17
  %v66 = vunpack.c.l.b16 %v18
  %v67 = vunpack.c.l.b16 %v19
  %v68 = vunpack.c.l.b16 %v20
  %v69 = vunpack.c.l.b16 %v21
  %v70 = vunpack.c.l.b16 %v22
  %v71 = vunpack.c.l.b16 %v23
  %v72 = vunpack.c.l.b16 %v24
  %v73 = vunpack.c.l.b16 %v25
  %v74 = vunpack.c.l.b16 %v26
  %v75 = vunpack.c.l.b16 %v27
  %v76 = vunpack.c.l.b16 %v28
  %v77 = vunpack.c.l.b16 %v29
  %v78 = vunpack.c.l.b16 %v30
  %v79 = vpack.c.b16 %v64, %v63
  %v80 = vpack.c.b16 %v66, %v65
  %v81 = vpack.c.b16 %v68, %v67
  %v82 = vpack.c.b16 %v70, %v69
  %v83 = vpack.c.b16 %v72, %v71
  %v84 = vpack.c.b16 %v74, %v73
  %v85 = vpack.c.b16 %v76, %v75
  %v86 = vpack.c.b16 %v78, %v77
  %v111 = vunpack.c.l.b16 %v31
  %v112 = vunpack.c.l.b16 %v32
  %v113 = vunpack.c.l.b16 %v33
  %v114 = vunpack.c.l.b16 %v34
  %v115 = vunpack.c.l.b16 %v35
  %v116 = vunpack.c.l.b16 %v36
  %v117 = vunpack.c.l.b16 %v37
  %v118 = vunpack.c.l.b16 %v38
  %v119 = vunpack.c.l.b16 %v39
  %v120 = vunpack.c.l.b16 %v40
  %v121 = vunpack.c.l.b16 %v41
  %v122 = vunpack.c.l.b16 %v42
  %v123 = vunpack.c.l.b16 %v43
  %v124 = vunpack.c.l.b16 %v44
  %v125 = vunpack.c.l.b16 %v45
  %v126 = vunpack.c.l.b16 %v46
  %v127 = vpack.c.b16 %v112, %v111
  %v128 = vpack.c.b16 %v114, %v113
  %v129 = vpack.c.b16 %v116, %v115
  %v130 = vpack.c.b16 %v118, %v117
  %v131 = vpack.c.b16 %v120, %v119
  %v132 = vpack.c.b16 %v122, %v121
  %v133 = vpack.c.b16 %v124, %v123
  %v134 = vpack.c.b16 %v126, %v125
  %143 = vmatprep.subr.bf16.mxu0 0
  %144 = vmatpush1.bf16.msra.mxu0 %v127
  %145 = vmatprep.subr.bf16.mxu0 0
  %146 = vmatpush1.bf16.msra.mxu0 %v128
  %147 = vmatprep.subr.bf16.mxu0 0
  %148 = vmatpush1.bf16.msra.mxu0 %v129
  %149 = vmatprep.subr.bf16.mxu0 0
  %150 = vmatpush1.bf16.msra.mxu0 %v130
  %151 = vmatprep.subr.bf16.mxu0 0
  %152 = vmatpush1.bf16.msra.mxu0 %v131
  %153 = vmatprep.subr.bf16.mxu0 0
  %154 = vmatpush1.bf16.msra.mxu0 %v132
  %155 = vmatprep.subr.bf16.mxu0 0
  %156 = vmatpush1.bf16.msra.mxu0 %v133
  %157 = vmatprep.subr.bf16.mxu0 0
  %158 = vmatpush1.bf16.msra.mxu0 %v134
  %159 = vmatprep.subr.bf16.mxu0 0
  %160 = vmatpush1.bf16.msra.mxu0 0
  %161 = vmatprep.subr.bf16.mxu0 0
  %162 = vmatpush1.bf16.msra.mxu0 0
  %163 = vmatprep.subr.bf16.mxu0 0
  %164 = vmatpush1.bf16.msra.mxu0 0
  %165 = vmatprep.subr.bf16.mxu0 0
  %166 = vmatpush1.bf16.msra.mxu0 0
  %167 = vmatprep.subr.bf16.mxu0 0
  %168 = vmatpush1.bf16.msra.mxu0 0
  %169 = vmatprep.subr.bf16.mxu0 0
  %170 = vmatpush1.bf16.msra.mxu0 0
  %171 = vmatprep.subr.bf16.mxu0 0
  %172 = vmatpush1.bf16.msra.mxu0 0
  %173 = vmatprep.subr.bf16.mxu0 0
  %174 = vmatpush1.bf16.msra.mxu0 0
  %175 = vmatprep.mubr.bf16.mxu0 0
  %176 = vmatmul.mubr.bf16.gmra.mrb[0].mxu0 %v79
  %v177 = vpop.f32.mrb[0].mxu0
  %v178 = vadd.f32 0.0, %v177
  %v179 = vpop.f32.mrb[0].mxu0
  %v180 = vpop.f32.mrb[0].mxu0
  %v181 = vadd.f32 0.0, %v180
  %v182 = vpop.f32.mrb[0].mxu0
  %183 = vmatprep.mubr.bf16.mxu0 0
  %184 = vmatmul.mubr.bf16.gmra.mrb[0].mxu0 %v80
  %v185 = vpop.f32.mrb[0].mxu0
  %v186 = vadd.f32 0.0, %v185
  %v187 = vpop.f32.mrb[0].mxu0
  %v188 = vpop.f32.mrb[0].mxu0
  %v189 = vadd.f32 0.0, %v188
  %v190 = vpop.f32.mrb[0].mxu0
  %191 = vmatprep.mubr.bf16.mxu0 0
  %192 = vmatmul.mubr.bf16.gmra.mrb[0].mxu0 %v81
  %v193 = vpop.f32.mrb[0].mxu0
  %v194 = vadd.f32 0.0, %v193
  %v195 = vpop.f32.mrb[0].mxu0
  %v196 = vpop.f32.mrb[0].mxu0
  %v197 = vadd.f32 0.0, %v196
  %v198 = vpop.f32.mrb[0].mxu0
  %199 = vmatprep.mubr.bf16.mxu0 0
  %200 = vmatmul.mubr.bf16.gmra.mrb[0].mxu0 %v82
  %v201 = vpop.f32.mrb[0].mxu0
  %v202 = vadd.f32 0.0, %v201
  %v203 = vpop.f32.mrb[0].mxu0
  %v204 = vpop.f32.mrb[0].mxu0
  %v205 = vadd.f32 0.0, %v204
  %v206 = vpop.f32.mrb[0].mxu0
  %207 = vmatprep.mubr.bf16.mxu0 0
  %208 = vmatmul.mubr.bf16.gmra.mrb[0].mxu0 %v83
  %v209 = vpop.f32.mrb[0].mxu0
  %v210 = vadd.f32 0.0, %v209
  %v211 = vpop.f32.mrb[0].mxu0
  %v212 = vpop.f32.mrb[0].mxu0
  %v213 = vadd.f32 0.0, %v212
  %v214 = vpop.f32.mrb[0].mxu0
  %215 = vmatprep.mubr.bf16.mxu0 0
  %216 = vmatmul.mubr.bf16.gmra.mrb[0].mxu0 %v84
  %v217 = vpop.f32.mrb[0].mxu0
  %v218 = vadd.f32 0.0, %v217
  %v219 = vpop.f32.mrb[0].mxu0
  %v220 = vpop.f32.mrb[0].mxu0
  %v221 = vadd.f32 0.0, %v220
  %v222 = vpop.f32.mrb[0].mxu0
  %223 = vmatprep.mubr.bf16.mxu0 0
  %224 = vmatmul.mubr.bf16.gmra.mrb[0].mxu0 %v85
  %v225 = vpop.f32.mrb[0].mxu0
  %v226 = vadd.f32 0.0, %v225
  %v227 = vpop.f32.mrb[0].mxu0
  %v228 = vpop.f32.mrb[0].mxu0
  %v229 = vadd.f32 0.0, %v228
  %v230 = vpop.f32.mrb[0].mxu0
  %231 = vmatprep.mubr.bf16.mxu0 0
  %232 = vmatmul.mubr.bf16.gmra.mrb[0].mxu0 %v86
  %v233 = vpop.f32.mrb[0].mxu0
  %v234 = vadd.f32 0.0, %v233
  %v235 = vpop.f32.mrb[0].mxu0
  %v236 = vpop.f32.mrb[0].mxu0
  %v237 = vadd.f32 0.0, %v236
  %v238 = vpop.f32.mrb[0].mxu0
  %239 = vdwg.mxu0
  %v240 = vpack.c.bf16 %v181, %v178
  %v241 = vpack.c.bf16 %v189, %v186
  %v242 = vpack.c.bf16 %v197, %v194
  %v243 = vpack.c.bf16 %v205, %v202
  %v244 = vpack.c.bf16 %v213, %v210
  %v245 = vpack.c.bf16 %v221, %v218
  %v246 = vpack.c.bf16 %v229, %v226
  %v247 = vpack.c.bf16 %v237, %v234
  %v256 = vunpack.c.l.b16 %v240
  %v257 = vunpack.c.h.b16 %v240
  %v258 = vunpack.c.l.b16 %v241
  %v259 = vunpack.c.h.b16 %v241
  %v260 = vunpack.c.l.b16 %v242
  %v261 = vunpack.c.h.b16 %v242
  %v262 = vunpack.c.l.b16 %v243
  %v263 = vunpack.c.h.b16 %v243
  %v264 = vunpack.c.l.b16 %v244
  %v265 = vunpack.c.h.b16 %v244
  %v266 = vunpack.c.l.b16 %v245
  %v267 = vunpack.c.h.b16 %v245
  %v268 = vunpack.c.l.b16 %v246
  %v269 = vunpack.c.h.b16 %v246
  %v270 = vunpack.c.l.b16 %v247
  %v271 = vunpack.c.h.b16 %v247
  %v272 = vpack.c.b16 %v256, %v256
  %v273 = vpack.c.b16 %v257, %v257
  %v274 = vpack.c.b16 %v258, %v258
  %v275 = vpack.c.b16 %v259, %v259
  %v276 = vpack.c.b16 %v260, %v260
  %v277 = vpack.c.b16 %v261, %v261
  %v278 = vpack.c.b16 %v262, %v262
  %v279 = vpack.c.b16 %v263, %v263
  %v280 = vpack.c.b16 %v264, %v264
  %v281 = vpack.c.b16 %v265, %v265
  %v282 = vpack.c.b16 %v266, %v266
  %v283 = vpack.c.b16 %v267, %v267
  %v284 = vpack.c.b16 %v268, %v268
  %v285 = vpack.c.b16 %v269, %v269
  %v286 = vpack.c.b16 %v270, %v270
  %v287 = vpack.c.b16 %v271, %v271
  %304 = vst [vmem:[%s2] sm:$0xf] %v272
  %305 = vst [vmem:[%s2 + $0x4] sm:$0xf] %v273
  %306 = vst [vmem:[%s2 + $0x8] sm:$0xf] %v274
  %307 = vst [vmem:[%s2 + $0xc] sm:$0xf] %v275
  %308 = vst [vmem:[%s2 + $0x10] sm:$0xf] %v276
  %309 = vst [vmem:[%s2 + $0x14] sm:$0xf] %v277
  %310 = vst [vmem:[%s2 + $0x18] sm:$0xf] %v278
  %311 = vst [vmem:[%s2 + $0x1c] sm:$0xf] %v279
  %312 = vst [vmem:[%s2 + $0x20] sm:$0xf] %v280
  %313 = vst [vmem:[%s2 + $0x24] sm:$0xf] %v281
  %314 = vst [vmem:[%s2 + $0x28] sm:$0xf] %v282
  %315 = vst [vmem:[%s2 + $0x2c] sm:$0xf] %v283
  %316 = vst [vmem:[%s2 + $0x30] sm:$0xf] %v284
  %317 = vst [vmem:[%s2 + $0x34] sm:$0xf] %v285
  %318 = vst [vmem:[%s2 + $0x38] sm:$0xf] %v286
  %319 = vst [vmem:[%s2 + $0x3c] sm:$0xf] %v287
  %v320 = vadd.f32 %v178, %v181
  %v321 = vadd.f32 %v320, %v186
  %v322 = vadd.f32 %v321, %v189
  %v323 = vadd.f32 %v322, %v194
  %v324 = vadd.f32 %v323, %v197
  %v325 = vadd.f32 %v324, %v202
  %v326 = vadd.f32 %v325, %v205
  %v327 = vadd.f32 %v326, %v210
  %v328 = vadd.f32 %v327, %v213
  %v329 = vadd.f32 %v328, %v218
  %v330 = vadd.f32 %v329, %v221
  %v331 = vadd.f32 %v330, %v226
  %v332 = vadd.f32 %v331, %v229
  %v333 = vadd.f32 %v332, %v234
  %v334 = vadd.f32 %v333, %v237
  %v335 = vrot.slane %v334, 4
  %v336 = vadd.f32 %v334, %v335
  %v337 = vrot.slane %v336, 2
  %v338 = vadd.f32 %v336, %v337
  %v339 = vrot.slane %v338, 1
  %v340 = vadd.f32 %v338, %v339
  %341 = vst [vmem:[%s3] sm:$0x1] %v340
  %v342 = vmul.f32 %v178, %v178
  %v343 = vmul.f32 %v181, %v181
  %v344 = vmul.f32 %v186, %v186
  %v345 = vmul.f32 %v189, %v189
  %v346 = vmul.f32 %v194, %v194
  %v347 = vmul.f32 %v197, %v197
  %v348 = vmul.f32 %v202, %v202
  %v349 = vmul.f32 %v205, %v205
  %v350 = vmul.f32 %v210, %v210
  %v351 = vmul.f32 %v213, %v213
  %v352 = vmul.f32 %v218, %v218
  %v353 = vmul.f32 %v221, %v221
  %v354 = vmul.f32 %v226, %v226
  %v355 = vmul.f32 %v229, %v229
  %v356 = vmul.f32 %v234, %v234
  %v357 = vmul.f32 %v237, %v237
  %v358 = vadd.f32 %v342, %v343
  %v359 = vadd.f32 %v358, %v344
  %v360 = vadd.f32 %v359, %v345
  %v361 = vadd.f32 %v360, %v346
  %v362 = vadd.f32 %v361, %v347
  %v363 = vadd.f32 %v362, %v348
  %v364 = vadd.f32 %v363, %v349
  %v365 = vadd.f32 %v364, %v350
  %v366 = vadd.f32 %v365, %v351
  %v367 = vadd.f32 %v366, %v352
  %v368 = vadd.f32 %v367, %v353
  %v369 = vadd.f32 %v368, %v354
  %v370 = vadd.f32 %v369, %v355
  %v371 = vadd.f32 %v370, %v356
  %v372 = vadd.f32 %v371, %v357
  %v373 = vrot.slane %v372, 4
  %v374 = vadd.f32 %v372, %v373
  %v375 = vrot.slane %v374, 2
  %v376 = vadd.f32 %v374, %v375
  %v377 = vrot.slane %v376, 1
  %v378 = vadd.f32 %v376, %v377
  %379 = vst [vmem:[%s4] sm:$0x1] %v378
  // Predicated region
  $region10: #{basic_block_forward.3} parent=0 // pred_check
    _
  $region11: #{basic_block_forward.3} parent=0 // pred_check_branch
    %381 = sbr.rel (0) target = $region13
  $region12: #{basic_block_forward.3} parent=0 // pred_region
    _
  $region13: #{basic_block_forward.3} parent=0 // pred_fallthru
    _
  // Predicated region
  $region14: #{basic_block_forward.3} parent=0 // pred_check
    _
  $region15: #{basic_block_forward.3} parent=0 // pred_check_branch
    %383 = sbr.rel (0) target = $region17
  $region16: #{basic_block_forward.3} parent=0 // pred_region
    _
  $region17: #{basic_block_forward.3} parent=0 // pred_fallthru
    _
  // Predicated region
  $region18: #{basic_block_forward.3} parent=0 // pred_check
    _
  $region19: #{basic_block_forward.3} parent=0 // pred_check_branch
    %385 = sbr.rel (0) target = $region21
  $region20: #{basic_block_forward.3} parent=0 // pred_region
    _
  $region21: #{basic_block_forward.3} parent=0 // pred_fallthru
    _
  // Predicated region
  $region22: #{basic_block_forward.3} parent=0 // pred_check
    _
  $region23: #{basic_block_forward.3} parent=0 // pred_check_branch
    %387 = sbr.rel (0) target = $region25
  $region24: #{basic_block_forward.3} parent=0 // pred_region
    _
  $region25: #{basic_block_forward.3} parent=0 // pred_fallthru
    _
  // Predicated region
  $region26: #{basic_block_forward.3} parent=0 // pred_check
    _
  $region27: #{basic_block_forward.3} parent=0 // pred_check_branch
    %389 = sbr.rel (0) target = $region29
  $region28: #{basic_block_forward.3} parent=0 // pred_region
    _
  $region29: #{basic_block_forward.3} parent=0 // pred_fallthru
    _
  // Predicated region
  $region30: #{basic_block_forward.3} parent=0 // pred_check
    _
  $region31: #{basic_block_forward.3} parent=0 // pred_check_branch
    %391 = sbr.rel (0) target = $region33
  $region32: #{basic_block_forward.3} parent=0 // pred_region
    _
  $region33: #{basic_block_forward.3} parent=0 // pred_fallthru
    _

// kernel: basic_block_forward.5
$region0: #{basic_block_forward.5}
  #allocation0 [shape = 'u32[]', space=smem, size = 0x4, offset = 0x4, fixed_abs, tag = 'smem constant byte address 0x4 - core index']
  #allocation1 [shape = 'u32[144,128]{1,0:T(1,128)}', space=vmem, size = 0x12000, scoped, tag = 'internal scratch']
  %s0 = inlined_call_operand.vmem [shape: bf16[128,128], index: 0, kind: input, shape index: {}]
  %s1 = inlined_call_operand.vmem [shape: f32[1,128], index: 1, kind: input, shape index: {}]
  %s2 = inlined_call_operand.vmem [shape: f32[1,128], index: 2, kind: input, shape index: {}]
  %s3 = inlined_call_operand.vmem [shape: f32[128,128], index: 3, kind: output, shape index: {}]
  %s4 = sld [smem:[#allocation0]]
  $region22: #{basic_block_forward.5} parent=0
    _
  %s6 = ssub.s32 1, %s4
  %s7 = scalar_select 0, %s6, %s4
  // Predicated region
  $region2: #{basic_block_forward.5} parent=0 // pred_check
    _
  $region3: #{basic_block_forward.5} parent=0 // pred_check_branch
    %9 = sbr.rel (0) target = $region5
  $region4: #{basic_block_forward.5} parent=0 // pred_region
    _
  $region5: #{basic_block_forward.5} parent=0 // pred_fallthru
    _
  // Predicated region
  $region6: #{basic_block_forward.5} parent=0 // pred_check
    _
  $region7: #{basic_block_forward.5} parent=0 // pred_check_branch
    %11 = sbr.rel (0) target = $region9
  $region8: #{basic_block_forward.5} parent=0 // pred_region
    _
  $region9: #{basic_block_forward.5} parent=0 // pred_fallthru
    _
  // Predicated region
  $region10: #{basic_block_forward.5} parent=0 // pred_check
    _
  $region11: #{basic_block_forward.5} parent=0 // pred_check_branch
    %13 = sbr.rel (0) target = $region13
  $region12: #{basic_block_forward.5} parent=0 // pred_region
    _
  $region13: #{basic_block_forward.5} parent=0 // pred_fallthru
    _
  %v14 = vld [vmem:[%s0] sm:$0xf]
  %v15 = vld [vmem:[%s0 + $0x4] sm:$0xf]
  %v16 = vld [vmem:[%s0 + $0x8] sm:$0xf]
  %v17 = vld [vmem:[%s0 + $0xc] sm:$0xf]
  %v18 = vld [vmem:[%s0 + $0x10] sm:$0xf]
  %v19 = vld [vmem:[%s0 + $0x14] sm:$0xf]
  %v20 = vld [vmem:[%s0 + $0x18] sm:$0xf]
  %v21 = vld [vmem:[%s0 + $0x1c] sm:$0xf]
  %v22 = vld [vmem:[%s0 + $0x20] sm:$0xf]
  %v23 = vld [vmem:[%s0 + $0x24] sm:$0xf]
  %v24 = vld [vmem:[%s0 + $0x28] sm:$0xf]
  %v25 = vld [vmem:[%s0 + $0x2c] sm:$0xf]
  %v26 = vld [vmem:[%s0 + $0x30] sm:$0xf]
  %v27 = vld [vmem:[%s0 + $0x34] sm:$0xf]
  %v28 = vld [vmem:[%s0 + $0x38] sm:$0xf]
  %v29 = vld [vmem:[%s0 + $0x3c] sm:$0xf]
  %v30 = vunpack.c.l.bf16 %v14
  %v31 = vunpack.c.l.bf16 %v15
  %v32 = vunpack.c.l.bf16 %v16
  %v33 = vunpack.c.l.bf16 %v17
  %v34 = vunpack.c.l.bf16 %v18
  %v35 = vunpack.c.l.bf16 %v19
  %v36 = vunpack.c.l.bf16 %v20
  %v37 = vunpack.c.l.bf16 %v21
  %v38 = vunpack.c.l.bf16 %v22
  %v39 = vunpack.c.l.bf16 %v23
  %v40 = vunpack.c.l.bf16 %v24
  %v41 = vunpack.c.l.bf16 %v25
  %v42 = vunpack.c.l.bf16 %v26
  %v43 = vunpack.c.l.bf16 %v27
  %v44 = vunpack.c.l.bf16 %v28
  %v45 = vunpack.c.l.bf16 %v29
  %v46 = vld [vmem:[%s1] sm:$0x1]
  %v48 = vlaneseq
  %v49 = vshrl.u32 %v48, 7
  %v50 = vsub.s32 0, %v49
  %v51 = vrot.slane %v46, %v50
  %v53 = vmul.f32 %v30, %v51
  %v54 = vmul.f32 %v31, %v51
  %v55 = vmul.f32 %v32, %v51
  %v56 = vmul.f32 %v33, %v51
  %v57 = vmul.f32 %v34, %v51
  %v58 = vmul.f32 %v35, %v51
  %v59 = vmul.f32 %v36, %v51
  %v60 = vmul.f32 %v37, %v51
  %v61 = vmul.f32 %v38, %v51
  %v62 = vmul.f32 %v39, %v51
  %v63 = vmul.f32 %v40, %v51
  %v64 = vmul.f32 %v41, %v51
  %v65 = vmul.f32 %v42, %v51
  %v66 = vmul.f32 %v43, %v51
  %v67 = vmul.f32 %v44, %v51
  %v68 = vmul.f32 %v45, %v51
  %v69 = vld [vmem:[%s2] sm:$0x1]
  %v71 = vlaneseq
  %v72 = vshrl.u32 %v71, 7
  %v73 = vsub.s32 0, %v72
  %v74 = vrot.slane %v69, %v73
  %v76 = vadd.f32 %v53, %v74
  %v77 = vadd.f32 %v54, %v74
  %v78 = vadd.f32 %v55, %v74
  %v79 = vadd.f32 %v56, %v74
  %v80 = vadd.f32 %v57, %v74
  %v81 = vadd.f32 %v58, %v74
  %v82 = vadd.f32 %v59, %v74
  %v83 = vadd.f32 %v60, %v74
  %v84 = vadd.f32 %v61, %v74
  %v85 = vadd.f32 %v62, %v74
  %v86 = vadd.f32 %v63, %v74
  %v87 = vadd.f32 %v64, %v74
  %v88 = vadd.f32 %v65, %v74
  %v89 = vadd.f32 %v66, %v74
  %v90 = vadd.f32 %v67, %v74
  %v91 = vadd.f32 %v68, %v74
  %v92 = vmax.f32 %v76, 0.0
  %v93 = vmax.f32 %v77, 0.0
  %v94 = vmax.f32 %v78, 0.0
  %v95 = vmax.f32 %v79, 0.0
  %v96 = vmax.f32 %v80, 0.0
  %v97 = vmax.f32 %v81, 0.0
  %v98 = vmax.f32 %v82, 0.0
  %v99 = vmax.f32 %v83, 0.0
  %v100 = vmax.f32 %v84, 0.0
  %v101 = vmax.f32 %v85, 0.0
  %v102 = vmax.f32 %v86, 0.0
  %v103 = vmax.f32 %v87, 0.0
  %v104 = vmax.f32 %v88, 0.0
  %v105 = vmax.f32 %v89, 0.0
  %v106 = vmax.f32 %v90, 0.0
  %v107 = vmax.f32 %v91, 0.0
  %108 = vst [vmem:[%s3] sm:$0xff] %v92
  %109 = vst [vmem:[%s3 + $0x8] sm:$0xff] %v93
  %110 = vst [vmem:[%s3 + $0x10] sm:$0xff] %v94
  %111 = vst [vmem:[%s3 + $0x18] sm:$0xff] %v95
  %112 = vst [vmem:[%s3 + $0x20] sm:$0xff] %v96
  %113 = vst [vmem:[%s3 + $0x28] sm:$0xff] %v97
  %114 = vst [vmem:[%s3 + $0x30] sm:$0xff] %v98
  %115 = vst [vmem:[%s3 + $0x38] sm:$0xff] %v99
  %116 = vst [vmem:[%s3 + $0x40] sm:$0xff] %v100
  %117 = vst [vmem:[%s3 + $0x48] sm:$0xff] %v101
  %118 = vst [vmem:[%s3 + $0x50] sm:$0xff] %v102
  %119 = vst [vmem:[%s3 + $0x58] sm:$0xff] %v103
  %120 = vst [vmem:[%s3 + $0x60] sm:$0xff] %v104
  %121 = vst [vmem:[%s3 + $0x68] sm:$0xff] %v105
  %122 = vst [vmem:[%s3 + $0x70] sm:$0xff] %v106
  %123 = vst [vmem:[%s3 + $0x78] sm:$0xff] %v107
  // Predicated region
  $region14: #{basic_block_forward.5} parent=0 // pred_check
    _
  $region15: #{basic_block_forward.5} parent=0 // pred_check_branch
    %125 = sbr.rel (0) target = $region17
  $region16: #{basic_block_forward.5} parent=0 // pred_region
    _
  $region17: #{basic_block_forward.5} parent=0 // pred_fallthru
    _
  // Predicated region
  $region18: #{basic_block_forward.5} parent=0 // pred_check
    _
  $region19: #{basic_block_forward.5} parent=0 // pred_check_branch
    %127 = sbr.rel (0) target = $region21
  $region20: #{basic_block_forward.5} parent=0 // pred_region
    _
  $region21: #{basic_block_forward.5} parent=0 // pred_fallthru
    _

// kernel: basic_block_forward.4
$region0: #{basic_block_forward.4}
  #allocation0 [shape = 'u32[]', space=smem, size = 0x4, offset = 0x4, fixed_abs, tag = 'smem constant byte address 0x4 - core index']
  #allocation1 [shape = 'u32[144,128]{1,0:T(1,128)}', space=vmem, size = 0x12000, scoped, tag = 'internal scratch']
  #allocation2 [shape = 'f32[10,10,128]{2,1,0:T(8,128)}', space=vmem, size = 0x14000, scoped, tag = 'scratch operand']
  %s0 = inlined_call_operand.vmem [shape: bf16[2,64,128], index: 0, kind: input, shape index: {}]
  %s1 = inlined_call_operand.vmem [shape: f32[1,128], index: 1, kind: input, shape index: {}]
  %s2 = inlined_call_operand.vmem [shape: f32[1,128], index: 2, kind: input, shape index: {}]
  %s3 = inlined_call_operand.vmem [shape: bf16[9,128,128], index: 3, kind: input, shape index: {}]
  %s4 = inlined_call_operand.vmem [shape: bf16[2,64,128], index: 4, kind: output, shape index: {0}]
  %s5 = inlined_call_operand.vmem [shape: f32[2,1,128], index: 5, kind: output, shape index: {1}]
  %s6 = inlined_call_operand.vmem [shape: f32[2,1,128], index: 6, kind: output, shape index: {2}]
  %7 = xla_tuple %s4, %s5, %s6
  %s8 = sld [smem:[#allocation0]]
  $region65: #{basic_block_forward.4} parent=0
    _
  %s10 = ssub.s32 1, %s8
  %s11 = scalar_select 0, %s10, %s8
  loop: start=0, step=1, limit=4
  $region2: #{basic_block_forward.4} parent=0 // loop_pre_header
    _
  $region3: #{basic_block_forward.4} parent=0 // loop_header
    %s13 = sphi 0, %s17
    %p14 = scmp.ge.s32.totalorder %s13, 4
    %s23 = sphi 0, %s25
    %s26 = sphi 0, %s23
    %s27 = sphi 0, %s26
    %s43 = sphi 0, %s27
    %s47 = sphi 0, %s47
    %s49 = sphi 0, %s47
    %s50 = sphi 0, %s49
    %s64 = sphi 0, %s50
    %s68 = sphi 0, %s68
    %s70 = sphi 0, %s68
    %s71 = sphi 0, %s70
    %s85 = sphi 0, %s71
    %s89 = sphi 0, %s89
    %s91 = sphi 0, %s89
    %s92 = sphi 0, %s91
    %s106 = sphi 0, %s92
    %s112 = sphi 0, %s114
    %s115 = sphi 0, %s112
    %s116 = sphi 0, %s115
    %s132 = sphi 0, %s116
    %s138 = sphi 0, %s140
    %s141 = sphi 0, %s138
    %s142 = sphi 0, %s141
    %s158 = sphi 0, %s142
    %s164 = sphi 0, %s166
    %s167 = sphi 0, %s164
    %s168 = sphi 0, %s167
    %s184 = sphi 0, %s168
  $region4: #{basic_block_forward.4} parent=0 // loop_header_branch
    %16 = sbr.rel (%p14) target = $region8
  $region5: #{basic_block_forward.4} parent=0 // loop_body
    %s18 = ssub.s32 %s13, 1
    %s19 = ssub.s32 %s13, 2
    %s20 = sadd.s32 %s13, 1
    %s21 = ssub.s32 %s13, %s20
    %p22 = scmp.eq.s32.totalorder %s21, 0
    %s24 = sadd.s32 %s23, 1
    %s25 = scalar_select %p22, %s23, %s24
    %p28 = pneg %p22
    %p29 = scmp.eq.s32.totalorder %s13, 1
    %p30 = por %p28, %p29
    %p31 = scmp.ne.s32.totalorder %s23, %s26
    %p32 = scmp.eq.s32.totalorder %s13, 0
    %p33 = por %p31, %p32
    %p34 = scmp.ne.s32.totalorder %s23, %s26
    %p35 = scmp.eq.s32.totalorder %s18, 1
    %p36 = por %p34, %p35
    %p37 = scmp.ne.s32.totalorder %s26, %s27
    %p38 = scmp.eq.s32.totalorder %s18, 0
    %p39 = por %p37, %p38
    %p40 = scmp.ne.s32.totalorder %s26, %s27
    %p41 = scmp.eq.s32.totalorder %s19, 1
    %p42 = por %p40, %p41
    %p44 = scmp.ne.s32.totalorder %s27, %s43
    %p45 = scmp.eq.s32.totalorder %s19, 0
    %p46 = por %p44, %p45
    %s48 = sadd.s32 %s47, 1
    %p51 = scmp.eq.s32.totalorder %s13, 1
    %p52 = scmp.ne.s32.totalorder %s47, %s49
    %p53 = scmp.eq.s32.totalorder %s13, 0
    %p54 = por %p52, %p53
    %p55 = scmp.ne.s32.totalorder %s47, %s49
    %p56 = scmp.eq.s32.totalorder %s18, 1
    %p57 = por %p55, %p56
    %p58 = scmp.ne.s32.totalorder %s49, %s50
    %p59 = scmp.eq.s32.totalorder %s18, 0
    %p60 = por %p58, %p59
    %p61 = scmp.ne.s32.totalorder %s49, %s50
    %p62 = scmp.eq.s32.totalorder %s19, 1
    %p63 = por %p61, %p62
    %p65 = scmp.ne.s32.totalorder %s50, %s64
    %p66 = scmp.eq.s32.totalorder %s19, 0
    %p67 = por %p65, %p66
    %s69 = sadd.s32 %s68, 1
    %p72 = scmp.eq.s32.totalorder %s13, 1
    %p73 = scmp.ne.s32.totalorder %s68, %s70
    %p74 = scmp.eq.s32.totalorder %s13, 0
    %p75 = por %p73, %p74
    %p76 = scmp.ne.s32.totalorder %s68, %s70
    %p77 = scmp.eq.s32.totalorder %s18, 1
    %p78 = por %p76, %p77
    %p79 = scmp.ne.s32.totalorder %s70, %s71
    %p80 = scmp.eq.s32.totalorder %s18, 0
    %p81 = por %p79, %p80
    %p82 = scmp.ne.s32.totalorder %s70, %s71
    %p83 = scmp.eq.s32.totalorder %s19, 1
    %p84 = por %p82, %p83
    %p86 = scmp.ne.s32.totalorder %s71, %s85
    %p87 = scmp.eq.s32.totalorder %s19, 0
    %p88 = por %p86, %p87
    %s90 = sadd.s32 %s89, 1
    %p93 = scmp.eq.s32.totalorder %s13, 1
    %p94 = scmp.ne.s32.totalorder %s89, %s91
    %p95 = scmp.eq.s32.totalorder %s13, 0
    %p96 = por %p94, %p95
    %p97 = scmp.ne.s32.totalorder %s89, %s91
    %p98 = scmp.eq.s32.totalorder %s18, 1
    %p99 = por %p97, %p98
    %p100 = scmp.ne.s32.totalorder %s91, %s92
    %p101 = scmp.eq.s32.totalorder %s18, 0
    %p102 = por %p100, %p101
    %p103 = scmp.ne.s32.totalorder %s91, %s92
    %p104 = scmp.eq.s32.totalorder %s19, 1
    %p105 = por %p103, %p104
    %p107 = scmp.ne.s32.totalorder %s92, %s106
    %p108 = scmp.eq.s32.totalorder %s19, 0
    %p109 = por %p107, %p108
    %s110 = ssub.s32 %s13, %s20
    %p111 = scmp.eq.s32.totalorder %s110, 0
    %s113 = sadd.s32 %s112, 1
    %s114 = scalar_select %p111, %s112, %s113
    %p117 = pneg %p111
    %p118 = scmp.eq.s32.totalorder %s13, 1
    %p119 = por %p117, %p118
    %p120 = scmp.ne.s32.totalorder %s112, %s115
    %p121 = scmp.eq.s32.totalorder %s13, 0
    %p122 = por %p120, %p121
    %p123 = scmp.ne.s32.totalorder %s112, %s115
    %p124 = scmp.eq.s32.totalorder %s18, 1
    %p125 = por %p123, %p124
    %p126 = scmp.ne.s32.totalorder %s115, %s116
    %p127 = scmp.eq.s32.totalorder %s18, 0
    %p128 = por %p126, %p127
    %p129 = scmp.ne.s32.totalorder %s115, %s116
    %p130 = scmp.eq.s32.totalorder %s19, 1
    %p131 = por %p129, %p130
    %p133 = scmp.ne.s32.totalorder %s116, %s132
    %p134 = scmp.eq.s32.totalorder %s19, 0
    %p135 = por %p133, %p134
    %s136 = ssub.s32 %s13, %s20
    %p137 = scmp.eq.s32.totalorder %s136, 0
    %s139 = sadd.s32 %s138, 1
    %s140 = scalar_select %p137, %s138, %s139
    %p143 = pneg %p137
    %p144 = scmp.eq.s32.totalorder %s13, 1
    %p145 = por %p143, %p144
    %p146 = scmp.ne.s32.totalorder %s138, %s141
    %p147 = scmp.eq.s32.totalorder %s13, 0
    %p148 = por %p146, %p147
    %p149 = scmp.ne.s32.totalorder %s138, %s141
    %p150 = scmp.eq.s32.totalorder %s18, 1
    %p151 = por %p149, %p150
    %p152 = scmp.ne.s32.totalorder %s141, %s142
    %p153 = scmp.eq.s32.totalorder %s18, 0
    %p154 = por %p152, %p153
    %p155 = scmp.ne.s32.totalorder %s141, %s142
    %p156 = scmp.eq.s32.totalorder %s19, 1
    %p157 = por %p155, %p156
    %p159 = scmp.ne.s32.totalorder %s142, %s158
    %p160 = scmp.eq.s32.totalorder %s19, 0
    %p161 = por %p159, %p160
    %s162 = ssub.s32 %s13, %s20
    %p163 = scmp.eq.s32.totalorder %s162, 0
    %s165 = sadd.s32 %s164, 1
    %s166 = scalar_select %p163, %s164, %s165
    %p169 = pneg %p163
    %p170 = scmp.eq.s32.totalorder %s13, 1
    %p171 = por %p169, %p170
    %p172 = scmp.ne.s32.totalorder %s164, %s167
    %p173 = scmp.eq.s32.totalorder %s13, 0
    %p174 = por %p172, %p173
    %p175 = scmp.ne.s32.totalorder %s164, %s167
    %p176 = scmp.eq.s32.totalorder %s18, 1
    %p177 = por %p175, %p176
    %p178 = scmp.ne.s32.totalorder %s167, %s168
    %p179 = scmp.eq.s32.totalorder %s18, 0
    %p180 = por %p178, %p179
    %p181 = scmp.ne.s32.totalorder %s167, %s168
    %p182 = scmp.eq.s32.totalorder %s19, 1
    %p183 = por %p181, %p182
    %p185 = scmp.ne.s32.totalorder %s168, %s184
    %p186 = scmp.eq.s32.totalorder %s19, 0
    %p187 = por %p185, %p186
    %p188 = scmp.le.s32.totalorder 1, %s13
    %p189 = scmp.lt.s32.totalorder %s13, 3
    %p190 = pnand %p188, %p189
    %p191 = pneg %p190
    // Predicated region
    $region9: #{basic_block_forward.4} parent=5 // pred_check
      _
    $region10: #{basic_block_forward.4} parent=5 // pred_check_branch
      %193 = sbr.rel (%p190) target = $region12
    $region11: #{basic_block_forward.4} parent=5 // pred_region
      %s194 = ssub.s32 %s13, 1
      // Predicated region
      $region13: #{basic_block_forward.4} parent=11 // pred_check
        %p195 = pneg %p60
      $region14: #{basic_block_forward.4} parent=11 // pred_check_branch
        %197 = sbr.rel (%p195) target = $region16
      $region15: #{basic_block_forward.4} parent=11 // pred_region
        _
      $region16: #{basic_block_forward.4} parent=11 // pred_fallthru
        _
      // Predicated region
      $region17: #{basic_block_forward.4} parent=11 // pred_check
        %p198 = pneg %p81
      $region18: #{basic_block_forward.4} parent=11 // pred_check_branch
        %200 = sbr.rel (%p198) target = $region20
      $region19: #{basic_block_forward.4} parent=11 // pred_region
        _
      $region20: #{basic_block_forward.4} parent=11 // pred_fallthru
        _
      // Predicated region
      $region21: #{basic_block_forward.4} parent=11 // pred_check
        %p201 = pneg %p102
      $region22: #{basic_block_forward.4} parent=11 // pred_check_branch
        %203 = sbr.rel (%p201) target = $region24
      $region23: #{basic_block_forward.4} parent=11 // pred_region
        _
      $region24: #{basic_block_forward.4} parent=11 // pred_fallthru
        _
    $region12: #{basic_block_forward.4} parent=5 // pred_fallthru
      _
    %p204 = scmp.lt.s32.totalorder %s13, 2
    // Predicated region
    $region25: #{basic_block_forward.4} parent=5 // pred_check
      %p205 = pneg %p204
    $region26: #{basic_block_forward.4} parent=5 // pred_check_branch
      %207 = sbr.rel (%p205) target = $region28
    $region27: #{basic_block_forward.4} parent=5 // pred_region
      // Predicated region
      $region29: #{basic_block_forward.4} parent=27 // pred_check
        %p208 = pneg %p33
      $region30: #{basic_block_forward.4} parent=27 // pred_check_branch
        %210 = sbr.rel (%p208) target = $region32
      $region31: #{basic_block_forward.4} parent=27 // pred_region
        %p211 = scmp.lt.s32.totalorder %s13, 1
        %s212 = scalar_select %p211, %s13, 1
        %s213 = smul.addr %s212, 8
        %s214 = smul.addr %s213, 4
        %s215 = scalar_lea.vmem %s0, %s214
      $region32: #{basic_block_forward.4} parent=27 // pred_fallthru
        _
    $region28: #{basic_block_forward.4} parent=5 // pred_fallthru
      _
    %p216 = scmp.le.s32.totalorder 1, %s13
    %p217 = scmp.lt.s32.totalorder %s13, 3
    %p218 = pnand %p216, %p217
    %p219 = pneg %p218
    // Predicated region
    $region33: #{basic_block_forward.4} parent=5 // pred_check
      _
    $region34: #{basic_block_forward.4} parent=5 // pred_check_branch
      %221 = sbr.rel (%p218) target = $region36
    $region35: #{basic_block_forward.4} parent=5 // pred_region
      %s222 = ssub.s32 %s13, 1
      %p223 = scmp.lt.s32.totalorder %s18, 1
      %s224 = scalar_select %p223, %s18, 1
      %s225 = smul.addr %s224, 8
      %s226 = smul.addr %s225, 4
      %s227 = scalar_lea.vmem %s0, %s226
      %p228 = pneg %p39
      %p229 = pneg %p36
      %p230 = pneg %p60
      %p231 = pneg %p57
      %p232 = pneg %p81
      %p233 = pneg %p78
      %p234 = pneg %p102
      %p235 = pneg %p99
      %p236 = pneg %p128
      %p237 = pneg %p125
      %p238 = scmp.lt.s32.totalorder %s18, 1
      %s239 = scalar_select %p238, %s18, 1
      %s240 = smul.addr %s239, 8
      %s241 = smul.addr %s240, 4
      %s242 = scalar_lea.vmem %s4, %s241
      %p243 = pneg %p154
      %p244 = pneg %p151
      %p245 = scmp.lt.s32.totalorder %s18, 1
      %s246 = scalar_select %p245, %s18, 1
      %s247 = scalar_lea.vmem %s5, %s246
      %p248 = pneg %p180
      %p249 = pneg %p177
      %p250 = scmp.lt.s32.totalorder %s18, 1
      %s251 = scalar_select %p250, %s18, 1
      %s252 = scalar_lea.vmem %s6, %s251
      %p253 = scmp.lt.s32.totalorder %s18, 1
      %s254 = scalar_select %p253, %s18, 1
      %s255 = smul.addr %s254, 8
      %s256 = smul.addr %s255, 4
      %s257 = scalar_lea.vmem %s0, %s256
      %p258 = scmp.lt.s32.totalorder %s18, 1
      %s259 = scalar_select %p258, %s18, 1
      %s260 = smul.addr %s259, 8
      %s261 = smul.addr %s260, 4
      %s262 = scalar_lea.vmem %s4, %s261
      %p263 = scmp.lt.s32.totalorder %s18, 1
      %s264 = scalar_select %p263, %s18, 1
      %s265 = scalar_lea.vmem %s5, %s264
      %p266 = scmp.lt.s32.totalorder %s18, 1
      %s267 = scalar_select %p266, %s18, 1
      %s268 = scalar_lea.vmem %s6, %s267
      %v270 = vld [vmem:[%s257] sm:$0xf]
      %v271 = vld [vmem:[%s257 + $0x4] sm:$0xf]
      %v272 = vld [vmem:[%s257 + $0x8] sm:$0xf]
      %v273 = vld [vmem:[%s257 + $0xc] sm:$0xf]
      %v274 = vld [vmem:[%s257 + $0x10] sm:$0xf]
      %v275 = vld [vmem:[%s257 + $0x14] sm:$0xf]
      %v276 = vld [vmem:[%s257 + $0x18] sm:$0xf]
      %v277 = vld [vmem:[%s257 + $0x1c] sm:$0xf]
      %v278 = vunpack.c.l.bf16 %v270
      %v279 = vunpack.c.l.bf16 %v271
      %v280 = vunpack.c.l.bf16 %v272
      %v281 = vunpack.c.l.bf16 %v273
      %v282 = vunpack.c.l.bf16 %v274
      %v283 = vunpack.c.l.bf16 %v275
      %v284 = vunpack.c.l.bf16 %v276
      %v285 = vunpack.c.l.bf16 %v277
      %v286 = vld [vmem:[%s1] sm:$0x1]
      %v288 = vlaneseq
      %v289 = vshrl.u32 %v288, 7
      %v290 = vsub.s32 0, %v289
      %v291 = vrot.slane %v286, %v290
      %v293 = vmul.f32 %v278, %v291
      %v294 = vmul.f32 %v279, %v291
      %v295 = vmul.f32 %v280, %v291
      %v296 = vmul.f32 %v281, %v291
      %v297 = vmul.f32 %v282, %v291
      %v298 = vmul.f32 %v283, %v291
      %v299 = vmul.f32 %v284, %v291
      %v300 = vmul.f32 %v285, %v291
      %v301 = vld [vmem:[%s2] sm:$0x1]
      %v303 = vlaneseq
      %v304 = vshrl.u32 %v303, 7
      %v305 = vsub.s32 0, %v304
      %v306 = vrot.slane %v301, %v305
      %v308 = vadd.f32 %v293, %v306
      %v309 = vadd.f32 %v294, %v306
      %v310 = vadd.f32 %v295, %v306
      %v311 = vadd.f32 %v296, %v306
      %v312 = vadd.f32 %v297, %v306
      %v313 = vadd.f32 %v298, %v306
      %v314 = vadd.f32 %v299, %v306
      %v315 = vadd.f32 %v300, %v306
      %v316 = vmax.f32 %v308, 0.0
      %v317 = vmax.f32 %v309, 0.0
      %v318 = vmax.f32 %v310, 0.0
      %v319 = vmax.f32 %v311, 0.0
      %v320 = vmax.f32 %v312, 0.0
      %v321 = vmax.f32 %v313, 0.0
      %v322 = vmax.f32 %v314, 0.0
      %v323 = vmax.f32 %v315, 0.0
      %324 = vst [vmem:[#allocation2] sm:$0xff] 0.0
      %325 = vst [vmem:[#allocation2 + $0x8] sm:$0x3] 0.0
      %s326 = scalar_lea.vmem [#allocation2], 144
      %327 = vst [vmem:[%s326] sm:$0xff] 0.0
      %328 = vst [vmem:[%s326 + $0x8] sm:$0x3] 0.0
      %s329 = scalar_lea.vmem [#allocation2], 16
      %330 = vst [vmem:[%s329] sm:$0x1] 0.0
      %331 = vst [vmem:[%s329 + $0x10] sm:$0x1] 0.0
      %332 = vst [vmem:[%s329 + $0x20] sm:$0x1] 0.0
      %333 = vst [vmem:[%s329 + $0x30] sm:$0x1] 0.0
      %334 = vst [vmem:[%s329 + $0x40] sm:$0x1] 0.0
      %335 = vst [vmem:[%s329 + $0x50] sm:$0x1] 0.0
      %336 = vst [vmem:[%s329 + $0x60] sm:$0x1] 0.0
      %337 = vst [vmem:[%s329 + $0x70] sm:$0x1] 0.0
      %338 = vst [vmem:[%s329 + $0x9] sm:$0x1] 0.0
      %339 = vst [vmem:[%s329 + $0x19] sm:$0x1] 0.0
      %340 = vst [vmem:[%s329 + $0x29] sm:$0x1] 0.0
      %341 = vst [vmem:[%s329 + $0x39] sm:$0x1] 0.0
      %342 = vst [vmem:[%s329 + $0x49] sm:$0x1] 0.0
      %343 = vst [vmem:[%s329 + $0x59] sm:$0x1] 0.0
      %344 = vst [vmem:[%s329 + $0x69] sm:$0x1] 0.0
      %345 = vst [vmem:[%s329 + $0x79] sm:$0x1] 0.0
      %346 = vst [vmem:[%s329 + $0x1] sm:$0xff] %v316
      %347 = vst [vmem:[%s329 + $0x11] sm:$0xff] %v317
      %348 = vst [vmem:[%s329 + $0x21] sm:$0xff] %v318
      %349 = vst [vmem:[%s329 + $0x31] sm:$0xff] %v319
      %350 = vst [vmem:[%s329 + $0x41] sm:$0xff] %v320
      %351 = vst [vmem:[%s329 + $0x51] sm:$0xff] %v321
      %352 = vst [vmem:[%s329 + $0x61] sm:$0xff] %v322
      %353 = vst [vmem:[%s329 + $0x71] sm:$0xff] %v323
      %v354 = vld [vmem:[#allocation2] sm:$0xff]
      %v355 = vld [vmem:[#allocation2 + $0x10] sm:$0xff]
      %v356 = vld [vmem:[#allocation2 + $0x20] sm:$0xff]
      %v357 = vld [vmem:[#allocation2 + $0x30] sm:$0xff]
      %v358 = vld [vmem:[#allocation2 + $0x40] sm:$0xff]
      %v359 = vld [vmem:[#allocation2 + $0x50] sm:$0xff]
      %v360 = vld [vmem:[#allocation2 + $0x60] sm:$0xff]
      %v361 = vld [vmem:[#allocation2 + $0x70] sm:$0xff]
      %v362 = vpack.c.bf16 %v355, %v354
      %v363 = vpack.c.bf16 %v357, %v356
      %v364 = vpack.c.bf16 %v359, %v358
      %v365 = vpack.c.bf16 %v361, %v360
      %v366 = vld [vmem:[%s3] sm:$0xf]
      %v367 = vld [vmem:[%s3 + $0x4] sm:$0xf]
      %v368 = vld [vmem:[%s3 + $0x8] sm:$0xf]
      %v369 = vld [vmem:[%s3 + $0xc] sm:$0xf]
      %v370 = vld [vmem:[%s3 + $0x10] sm:$0xf]
      %v371 = vld [vmem:[%s3 + $0x14] sm:$0xf]
      %v372 = vld [vmem:[%s3 + $0x18] sm:$0xf]
      %v373 = vld [vmem:[%s3 + $0x1c] sm:$0xf]
      %v374 = vld [vmem:[%s3 + $0x20] sm:$0xf]
      %v375 = vld [vmem:[%s3 + $0x24] sm:$0xf]
      %v376 = vld [vmem:[%s3 + $0x28] sm:$0xf]
      %v377 = vld [vmem:[%s3 + $0x2c] sm:$0xf]
      %v378 = vld [vmem:[%s3 + $0x30] sm:$0xf]
      %v379 = vld [vmem:[%s3 + $0x34] sm:$0xf]
      %v380 = vld [vmem:[%s3 + $0x38] sm:$0xf]
      %v381 = vld [vmem:[%s3 + $0x3c] sm:$0xf]
      %v382 = vld [vmem:[#allocation2 + $0x1] sm:$0xff]
      %v383 = vld [vmem:[#allocation2 + $0x11] sm:$0xff]
      %v384 = vld [vmem:[#allocation2 + $0x21] sm:$0xff]
      %v385 = vld [vmem:[#allocation2 + $0x31] sm:$0xff]
      %v386 = vld [vmem:[#allocation2 + $0x41] sm:$0xff]
      %v387 = vld [vmem:[#allocation2 + $0x51] sm:$0xff]
      %v388 = vld [vmem:[#allocation2 + $0x61] sm:$0xff]
      %v389 = vld [vmem:[#allocation2 + $0x71] sm:$0xff]
      %v390 = vpack.c.bf16 %v383, %v382
      %v391 = vpack.c.bf16 %v385, %v384
      %v392 = vpack.c.bf16 %v387, %v386
      %v393 = vpack.c.bf16 %v389, %v388
      %s394 = scalar_lea.vmem %s3, 64
      %v395 = vld [vmem:[%s394] sm:$0xf]
      %v396 = vld [vmem:[%s394 + $0x4] sm:$0xf]
      %v397 = vld [vmem:[%s394 + $0x8] sm:$0xf]
      %v398 = vld [vmem:[%s394 + $0xc] sm:$0xf]
      %v399 = vld [vmem:[%s394 + $0x10] sm:$0xf]
      %v400 = vld [vmem:[%s394 + $0x14] sm:$0xf]
      %v401 = vld [vmem:[%s394 + $0x18] sm:$0xf]
      %v402 = vld [vmem:[%s394 + $0x1c] sm:$0xf]
      %v403 = vld [vmem:[%s394 + $0x20] sm:$0xf]
      %v404 = vld [vmem:[%s394 + $0x24] sm:$0xf]
      %v405 = vld [vmem:[%s394 + $0x28] sm:$0xf]
      %v406 = vld [vmem:[%s394 + $0x2c] sm:$0xf]
      %v407 = vld [vmem:[%s394 + $0x30] sm:$0xf]
      %v408 = vld [vmem:[%s394 + $0x34] sm:$0xf]
      %v409 = vld [vmem:[%s394 + $0x38] sm:$0xf]
      %v410 = vld [vmem:[%s394 + $0x3c] sm:$0xf]
      %v427 = vunpack.c.l.b16 %v395
      %v428 = vunpack.c.l.b16 %v396
      %v429 = vunpack.c.l.b16 %v397
      %v430 = vunpack.c.l.b16 %v398
      %v431 = vunpack.c.l.b16 %v399
      %v432 = vunpack.c.l.b16 %v400
      %v433 = vunpack.c.l.b16 %v401
      %v434 = vunpack.c.l.b16 %v402
      %v435 = vunpack.c.l.b16 %v403
      %v436 = vunpack.c.l.b16 %v404
      %v437 = vunpack.c.l.b16 %v405
      %v438 = vunpack.c.l.b16 %v406
      %v439 = vunpack.c.l.b16 %v407
      %v440 = vunpack.c.l.b16 %v408
      %v441 = vunpack.c.l.b16 %v409
      %v442 = vunpack.c.l.b16 %v410
      %v443 = vpack.c.b16 %v428, %v427
      %v444 = vpack.c.b16 %v430, %v429
      %v445 = vpack.c.b16 %v432, %v431
      %v446 = vpack.c.b16 %v434, %v433
      %v447 = vpack.c.b16 %v436, %v435
      %v448 = vpack.c.b16 %v438, %v437
      %v449 = vpack.c.b16 %v440, %v439
      %v450 = vpack.c.b16 %v442, %v441
      %459 = vmatprep.subr.bf16.mxu0 0
      %460 = vmatpush1.bf16.msra.mxu0 %v443
      %461 = vmatprep.subr.bf16.mxu0 0
      %462 = vmatpush1.bf16.msra.mxu0 %v444
      %463 = vmatprep.subr.bf16.mxu0 0
      %464 = vmatpush1.bf16.msra.mxu0 %v445
      %465 = vmatprep.subr.bf16.mxu0 0
      %466 = vmatpush1.bf16.msra.mxu0 %v446
      %467 = vmatprep.subr.bf16.mxu0 0
      %468 = vmatpush1.bf16.msra.mxu0 %v447
      %469 = vmatprep.subr.bf16.mxu0 0
      %470 = vmatpush1.bf16.msra.mxu0 %v448
      %471 = vmatprep.subr.bf16.mxu0 0
      %472 = vmatpush1.bf16.msra.mxu0 %v449
      %473 = vmatprep.subr.bf16.mxu0 0
      %474 = vmatpush1.bf16.msra.mxu0 %v450
      %475 = vmatprep.subr.bf16.mxu0 0
      %476 = vmatpush1.bf16.msra.mxu0 0
      %477 = vmatprep.subr.bf16.mxu0 0
      %478 = vmatpush1.bf16.msra.mxu0 0
      %479 = vmatprep.subr.bf16.mxu0 0
      %480 = vmatpush1.bf16.msra.mxu0 0
      %481 = vmatprep.subr.bf16.mxu0 0
      %482 = vmatpush1.bf16.msra.mxu0 0
      %483 = vmatprep.subr.bf16.mxu0 0
      %484 = vmatpush1.bf16.msra.mxu0 0
      %485 = vmatprep.subr.bf16.mxu0 0
      %486 = vmatpush1.bf16.msra.mxu0 0
      %487 = vmatprep.subr.bf16.mxu0 0
      %488 = vmatpush1.bf16.msra.mxu0 0
      %489 = vmatprep.subr.bf16.mxu0 0
      %490 = vmatpush1.bf16.msra.mxu0 0
      %491 = vmatprep.mubr.bf16.mxu0 0
      %492 = vmatmul.mubr.bf16.gmra.mrb[0].mxu0 %v390
      %v493 = vpop.f32.mrb[0].mxu0
      %v494 = vadd.f32 0.0, %v493
      %v495 = vpop.f32.mrb[0].mxu0
      %v496 = vpop.f32.mrb[0].mxu0
      %v497 = vadd.f32 0.0, %v496
      %v498 = vpop.f32.mrb[0].mxu0
      %499 = vmatprep.mubr.bf16.mxu0 0
      %500 = vmatmul.mubr.bf16.gmra.mrb[0].mxu0 %v391
      %v501 = vpop.f32.mrb[0].mxu0
      %v502 = vadd.f32 0.0, %v501
      %v503 = vpop.f32.mrb[0].mxu0
      %v504 = vpop.f32.mrb[0].mxu0
      %v505 = vadd.f32 0.0, %v504
      %v506 = vpop.f32.mrb[0].mxu0
      %507 = vmatprep.mubr.bf16.mxu0 0
      %508 = vmatmul.mubr.bf16.gmra.mrb[0].mxu0 %v392
      %v509 = vpop.f32.mrb[0].mxu0
      %v510 = vadd.f32 0.0, %v509
      %v511 = vpop.f32.mrb[0].mxu0
      %v512 = vpop.f32.mrb[0].mxu0
      %v513 = vadd.f32 0.0, %v512
      %v514 = vpop.f32.mrb[0].mxu0
      %515 = vmatprep.mubr.bf16.mxu0 0
      %516 = vmatmul.mubr.bf16.gmra.mrb[0].mxu0 %v393
      %v517 = vpop.f32.mrb[0].mxu0
      %v518 = vadd.f32 0.0, %v517
      %v519 = vpop.f32.mrb[0].mxu0
      %v520 = vpop.f32.mrb[0].mxu0
      %v521 = vadd.f32 0.0, %v520
      %v522 = vpop.f32.mrb[0].mxu0
      %523 = vdwg.mxu0
      %v540 = vunpack.c.l.b16 %v366
      %v541 = vunpack.c.l.b16 %v367
      %v542 = vunpack.c.l.b16 %v368
      %v543 = vunpack.c.l.b16 %v369
      %v544 = vunpack.c.l.b16 %v370
      %v545 = vunpack.c.l.b16 %v371
      %v546 = vunpack.c.l.b16 %v372
      %v547 = vunpack.c.l.b16 %v373
      %v548 = vunpack.c.l.b16 %v374
      %v549 = vunpack.c.l.b16 %v375
      %v550 = vunpack.c.l.b16 %v376
      %v551 = vunpack.c.l.b16 %v377
      %v552 = vunpack.c.l.b16 %v378
      %v553 = vunpack.c.l.b16 %v379
      %v554 = vunpack.c.l.b16 %v380
      %v555 = vunpack.c.l.b16 %v381
      %v556 = vpack.c.b16 %v541, %v540
      %v557 = vpack.c.b16 %v543, %v542
      %v558 = vpack.c.b16 %v545, %v544
      %v559 = vpack.c.b16 %v547, %v546
      %v560 = vpack.c.b16 %v549, %v548
      %v561 = vpack.c.b16 %v551, %v550
      %v562 = vpack.c.b16 %v553, %v552
      %v563 = vpack.c.b16 %v555, %v554
      %572 = vmatprep.subr.bf16.mxu0 0
      %573 = vmatpush1.bf16.msra.mxu0 %v556
      %574 = vmatprep.subr.bf16.mxu0 0
      %575 = vmatpush1.bf16.msra.mxu0 %v557
      %576 = vmatprep.subr.bf16.mxu0 0
      %577 = vmatpush1.bf16.msra.mxu0 %v558
      %578 = vmatprep.subr.bf16.mxu0 0
      %579 = vmatpush1.bf16.msra.mxu0 %v559
      %580 = vmatprep.subr.bf16.mxu0 0
      %581 = vmatpush1.bf16.msra.mxu0 %v560
      %582 = vmatprep.subr.bf16.mxu0 0
      %583 = vmatpush1.bf16.msra.mxu0 %v561
      %584 = vmatprep.subr.bf16.mxu0 0
      %585 = vmatpush1.bf16.msra.mxu0 %v562
      %586 = vmatprep.subr.bf16.mxu0 0
      %587 = vmatpush1.bf16.msra.mxu0 %v563
      %588 = vmatprep.subr.bf16.mxu0 0
      %589 = vmatpush1.bf16.msra.mxu0 0
      %590 = vmatprep.subr.bf16.mxu0 0
      %591 = vmatpush1.bf16.msra.mxu0 0
      %592 = vmatprep.subr.bf16.mxu0 0
      %593 = vmatpush1.bf16.msra.mxu0 0
      %594 = vmatprep.subr.bf16.mxu0 0
      %595 = vmatpush1.bf16.msra.mxu0 0
      %596 = vmatprep.subr.bf16.mxu0 0
      %597 = vmatpush1.bf16.msra.mxu0 0
      %598 = vmatprep.subr.bf16.mxu0 0
      %599 = vmatpush1.bf16.msra.mxu0 0
      %600 = vmatprep.subr.bf16.mxu0 0
      %601 = vmatpush1.bf16.msra.mxu0 0
      %602 = vmatprep.subr.bf16.mxu0 0
      %603 = vmatpush1.bf16.msra.mxu0 0
      %604 = vmatprep.mubr.bf16.mxu0 0
      %605 = vmatmul.mubr.bf16.gmra.mrb[0].mxu0 %v362
      %v606 = vpop.f32.mrb[0].mxu0
      %v607 = vadd.f32 %v494, %v606
      %v608 = vpop.f32.mrb[0].mxu0
      %v609 = vpop.f32.mrb[0].mxu0
      %v610 = vadd.f32 %v497, %v609
      %v611 = vpop.f32.mrb[0].mxu0
      %612 = vmatprep.mubr.bf16.mxu0 0
      %613 = vmatmul.mubr.bf16.gmra.mrb[0].mxu0 %v363
      %v614 = vpop.f32.mrb[0].mxu0
      %v615 = vadd.f32 %v502, %v614
      %v616 = vpop.f32.mrb[0].mxu0
      %v617 = vpop.f32.mrb[0].mxu0
      %v618 = vadd.f32 %v505, %v617
      %v619 = vpop.f32.mrb[0].mxu0
      %620 = vmatprep.mubr.bf16.mxu0 0
      %621 = vmatmul.mubr.bf16.gmra.mrb[0].mxu0 %v364
      %v622 = vpop.f32.mrb[0].mxu0
      %v623 = vadd.f32 %v510, %v622
      %v624 = vpop.f32.mrb[0].mxu0
      %v625 = vpop.f32.mrb[0].mxu0
      %v626 = vadd.f32 %v513, %v625
      %v627 = vpop.f32.mrb[0].mxu0
      %628 = vmatprep.mubr.bf16.mxu0 0
      %629 = vmatmul.mubr.bf16.gmra.mrb[0].mxu0 %v365
      %v630 = vpop.f32.mrb[0].mxu0
      %v631 = vadd.f32 %v518, %v630
      %v632 = vpop.f32.mrb[0].mxu0
      %v633 = vpop.f32.mrb[0].mxu0
      %v634 = vadd.f32 %v521, %v633
      %v635 = vpop.f32.mrb[0].mxu0
      %636 = vdwg.mxu0
      %v637 = vld [vmem:[#allocation2 + $0x2] sm:$0xff]
      %v638 = vld [vmem:[#allocation2 + $0x12] sm:$0xff]
      %v639 = vld [vmem:[#allocation2 + $0x22] sm:$0xff]
      %v640 = vld [vmem:[#allocation2 + $0x32] sm:$0xff]
      %v641 = vld [vmem:[#allocation2 + $0x42] sm:$0xff]
      %v642 = vld [vmem:[#allocation2 + $0x52] sm:$0xff]
      %v643 = vld [vmem:[#allocation2 + $0x62] sm:$0xff]
      %v644 = vld [vmem:[#allocation2 + $0x72] sm:$0xff]
      %v645 = vpack.c.bf16 %v638, %v637
      %v646 = vpack.c.bf16 %v640, %v639
      %v647 = vpack.c.bf16 %v642, %v641
      %v648 = vpack.c.bf16 %v644, %v643
      %s649 = scalar_lea.vmem %s3, 128
      %v650 = vld [vmem:[%s649] sm:$0xf]
      %v651 = vld [vmem:[%s649 + $0x4] sm:$0xf]
      %v652 = vld [vmem:[%s649 + $0x8] sm:$0xf]
      %v653 = vld [vmem:[%s649 + $0xc] sm:$0xf]
      %v654 = vld [vmem:[%s649 + $0x10] sm:$0xf]
      %v655 = vld [vmem:[%s649 + $0x14] sm:$0xf]
      %v656 = vld [vmem:[%s649 + $0x18] sm:$0xf]
      %v657 = vld [vmem:[%s649 + $0x1c] sm:$0xf]
      %v658 = vld [vmem:[%s649 + $0x20] sm:$0xf]
      %v659 = vld [vmem:[%s649 + $0x24] sm:$0xf]
      %v660 = vld [vmem:[%s649 + $0x28] sm:$0xf]
      %v661 = vld [vmem:[%s649 + $0x2c] sm:$0xf]
      %v662 = vld [vmem:[%s649 + $0x30] sm:$0xf]
      %v663 = vld [vmem:[%s649 + $0x34] sm:$0xf]
      %v664 = vld [vmem:[%s649 + $0x38] sm:$0xf]
      %v665 = vld [vmem:[%s649 + $0x3c] sm:$0xf]
      %v682 = vunpack.c.l.b16 %v650
      %v683 = vunpack.c.l.b16 %v651
      %v684 = vunpack.c.l.b16 %v652
      %v685 = vunpack.c.l.b16 %v653
      %v686 = vunpack.c.l.b16 %v654
      %v687 = vunpack.c.l.b16 %v655
      %v688 = vunpack.c.l.b16 %v656
      %v689 = vunpack.c.l.b16 %v657
      %v690 = vunpack.c.l.b16 %v658
      %v691 = vunpack.c.l.b16 %v659
      %v692 = vunpack.c.l.b16 %v660
      %v693 = vunpack.c.l.b16 %v661
      %v694 = vunpack.c.l.b16 %v662
      %v695 = vunpack.c.l.b16 %v663
      %v696 = vunpack.c.l.b16 %v664
      %v697 = vunpack.c.l.b16 %v665
      %v698 = vpack.c.b16 %v683, %v682
      %v699 = vpack.c.b16 %v685, %v684
      %v700 = vpack.c.b16 %v687, %v686
      %v701 = vpack.c.b16 %v689, %v688
      %v702 = vpack.c.b16 %v691, %v690
      %v703 = vpack.c.b16 %v693, %v692
      %v704 = vpack.c.b16 %v695, %v694
      %v705 = vpack.c.b16 %v697, %v696
      %714 = vmatprep.subr.bf16.mxu0 0
      %715 = vmatpush1.bf16.msra.mxu0 %v698
      %716 = vmatprep.subr.bf16.mxu0 0
      %717 = vmatpush1.bf16.msra.mxu0 %v699
      %718 = vmatprep.subr.bf16.mxu0 0
      %719 = vmatpush1.bf16.msra.mxu0 %v700
      %720 = vmatprep.subr.bf16.mxu0 0
      %721 = vmatpush1.bf16.msra.mxu0 %v701
      %722 = vmatprep.subr.bf16.mxu0 0
      %723 = vmatpush1.bf16.msra.mxu0 %v702
      %724 = vmatprep.subr.bf16.mxu0 0
      %725 = vmatpush1.bf16.msra.mxu0 %v703
      %726 = vmatprep.subr.bf16.mxu0 0
      %727 = vmatpush1.bf16.msra.mxu0 %v704
      %728 = vmatprep.subr.bf16.mxu0 0
      %729 = vmatpush1.bf16.msra.mxu0 %v705
      %730 = vmatprep.subr.bf16.mxu0 0
      %731 = vmatpush1.bf16.msra.mxu0 0
      %732 = vmatprep.subr.bf16.mxu0 0
      %733 = vmatpush1.bf16.msra.mxu0 0
      %734 = vmatprep.subr.bf16.mxu0 0
      %735 = vmatpush1.bf16.msra.mxu0 0
      %736 = vmatprep.subr.bf16.mxu0 0
      %737 = vmatpush1.bf16.msra.mxu0 0
      %738 = vmatprep.subr.bf16.mxu0 0
      %739 = vmatpush1.bf16.msra.mxu0 0
      %740 = vmatprep.subr.bf16.mxu0 0
      %741 = vmatpush1.bf16.msra.mxu0 0
      %742 = vmatprep.subr.bf16.mxu0 0
      %743 = vmatpush1.bf16.msra.mxu0 0
      %744 = vmatprep.subr.bf16.mxu0 0
      %745 = vmatpush1.bf16.msra.mxu0 0
      %746 = vmatprep.mubr.bf16.mxu0 0
      %747 = vmatmul.mubr.bf16.gmra.mrb[0].mxu0 %v645
      %v748 = vpop.f32.mrb[0].mxu0
      %v749 = vadd.f32 0.0, %v748
      %v750 = vpop.f32.mrb[0].mxu0
      %v751 = vpop.f32.mrb[0].mxu0
      %v752 = vadd.f32 0.0, %v751
      %v753 = vpop.f32.mrb[0].mxu0
      %754 = vmatprep.mubr.bf16.mxu0 0
      %755 = vmatmul.mubr.bf16.gmra.mrb[0].mxu0 %v646
      %v756 = vpop.f32.mrb[0].mxu0
      %v757 = vadd.f32 0.0, %v756
      %v758 = vpop.f32.mrb[0].mxu0
      %v759 = vpop.f32.mrb[0].mxu0
      %v760 = vadd.f32 0.0, %v759
      %v761 = vpop.f32.mrb[0].mxu0
      %762 = vmatprep.mubr.bf16.mxu0 0
      %763 = vmatmul.mubr.bf16.gmra.mrb[0].mxu0 %v647
      %v764 = vpop.f32.mrb[0].mxu0
      %v765 = vadd.f32 0.0, %v764
      %v766 = vpop.f32.mrb[0].mxu0
      %v767 = vpop.f32.mrb[0].mxu0
      %v768 = vadd.f32 0.0, %v767
      %v769 = vpop.f32.mrb[0].mxu0
      %770 = vmatprep.mubr.bf16.mxu0 0
      %771 = vmatmul.mubr.bf16.gmra.mrb[0].mxu0 %v648
      %v772 = vpop.f32.mrb[0].mxu0
      %v773 = vadd.f32 0.0, %v772
      %v774 = vpop.f32.mrb[0].mxu0
      %v775 = vpop.f32.mrb[0].mxu0
      %v776 = vadd.f32 0.0, %v775
      %v777 = vpop.f32.mrb[0].mxu0
      %778 = vdwg.mxu0
      %v779 = vadd.f32 %v607, %v749
      %v780 = vadd.f32 %v610, %v752
      %v781 = vadd.f32 %v615, %v757
      %v782 = vadd.f32 %v618, %v760
      %v783 = vadd.f32 %v623, %v765
      %v784 = vadd.f32 %v626, %v768
      %v785 = vadd.f32 %v631, %v773
      %v786 = vadd.f32 %v634, %v776
      %v787 = vld [vmem:[%s329] sm:$0xff]
      %v788 = vld [vmem:[%s329 + $0x10] sm:$0xff]
      %v789 = vld [vmem:[%s329 + $0x20] sm:$0xff]
      %v790 = vld [vmem:[%s329 + $0x30] sm:$0xff]
      %v791 = vld [vmem:[%s329 + $0x40] sm:$0xff]
      %v792 = vld [vmem:[%s329 + $0x50] sm:$0xff]
      %v793 = vld [vmem:[%s329 + $0x60] sm:$0xff]
      %v794 = vld [vmem:[%s329 + $0x70] sm:$0xff]
      %v795 = vpack.c.bf16 %v788, %v787
      %v796 = vpack.c.bf16 %v790, %v789
      %v797 = vpack.c.bf16 %v792, %v791
      %v798 = vpack.c.bf16 %v794, %v793
      %s799 = scalar_lea.vmem %s3, 192
      %v800 = vld [vmem:[%s799] sm:$0xf]
      %v801 = vld [vmem:[%s799 + $0x4] sm:$0xf]
      %v802 = vld [vmem:[%s799 + $0x8] sm:$0xf]
      %v803 = vld [vmem:[%s799 + $0xc] sm:$0xf]
      %v804 = vld [vmem:[%s799 + $0x10] sm:$0xf]
      %v805 = vld [vmem:[%s799 + $0x14] sm:$0xf]
      %v806 = vld [vmem:[%s799 + $0x18] sm:$0xf]
      %v807 = vld [vmem:[%s799 + $0x1c] sm:$0xf]
      %v808 = vld [vmem:[%s799 + $0x20] sm:$0xf]
      %v809 = vld [vmem:[%s799 + $0x24] sm:$0xf]
      %v810 = vld [vmem:[%s799 + $0x28] sm:$0xf]
      %v811 = vld [vmem:[%s799 + $0x2c] sm:$0xf]
      %v812 = vld [vmem:[%s799 + $0x30] sm:$0xf]
      %v813 = vld [vmem:[%s799 + $0x34] sm:$0xf]
      %v814 = vld [vmem:[%s799 + $0x38] sm:$0xf]
      %v815 = vld [vmem:[%s799 + $0x3c] sm:$0xf]
      %v832 = vunpack.c.l.b16 %v800
      %v833 = vunpack.c.l.b16 %v801
      %v834 = vunpack.c.l.b16 %v802
      %v835 = vunpack.c.l.b16 %v803
      %v836 = vunpack.c.l.b16 %v804
      %v837 = vunpack.c.l.b16 %v805
      %v838 = vunpack.c.l.b16 %v806
      %v839 = vunpack.c.l.b16 %v807
      %v840 = vunpack.c.l.b16 %v808
      %v841 = vunpack.c.l.b16 %v809
      %v842 = vunpack.c.l.b16 %v810
      %v843 = vunpack.c.l.b16 %v811
      %v844 = vunpack.c.l.b16 %v812
      %v845 = vunpack.c.l.b16 %v813
      %v846 = vunpack.c.l.b16 %v814
      %v847 = vunpack.c.l.b16 %v815
      %v848 = vpack.c.b16 %v833, %v832
      %v849 = vpack.c.b16 %v835, %v834
      %v850 = vpack.c.b16 %v837, %v836
      %v851 = vpack.c.b16 %v839, %v838
      %v852 = vpack.c.b16 %v841, %v840
      %v853 = vpack.c.b16 %v843, %v842
      %v854 = vpack.c.b16 %v845, %v844
      %v855 = vpack.c.b16 %v847, %v846
      %864 = vmatprep.subr.bf16.mxu0 0
      %865 = vmatpush1.bf16.msra.mxu0 %v848
      %866 = vmatprep.subr.bf16.mxu0 0
      %867 = vmatpush1.bf16.msra.mxu0 %v849
      %868 = vmatprep.subr.bf16.mxu0 0
      %869 = vmatpush1.bf16.msra.mxu0 %v850
      %870 = vmatprep.subr.bf16.mxu0 0
      %871 = vmatpush1.bf16.msra.mxu0 %v851
      %872 = vmatprep.subr.bf16.mxu0 0
      %873 = vmatpush1.bf16.msra.mxu0 %v852
      %874 = vmatprep.subr.bf16.mxu0 0
      %875 = vmatpush1.bf16.msra.mxu0 %v853
      %876 = vmatprep.subr.bf16.mxu0 0
      %877 = vmatpush1.bf16.msra.mxu0 %v854
      %878 = vmatprep.subr.bf16.mxu0 0
      %879 = vmatpush1.bf16.msra.mxu0 %v855
      %880 = vmatprep.subr.bf16.mxu0 0
      %881 = vmatpush1.bf16.msra.mxu0 0
      %882 = vmatprep.subr.bf16.mxu0 0
      %883 = vmatpush1.bf16.msra.mxu0 0
      %884 = vmatprep.subr.bf16.mxu0 0
      %885 = vmatpush1.bf16.msra.mxu0 0
      %886 = vmatprep.subr.bf16.mxu0 0
      %887 = vmatpush1.bf16.msra.mxu0 0
      %888 = vmatprep.subr.bf16.mxu0 0
      %889 = vmatpush1.bf16.msra.mxu0 0
      %890 = vmatprep.subr.bf16.mxu0 0
      %891 = vmatpush1.bf16.msra.mxu0 0
      %892 = vmatprep.subr.bf16.mxu0 0
      %893 = vmatpush1.bf16.msra.mxu0 0
      %894 = vmatprep.subr.bf16.mxu0 0
      %895 = vmatpush1.bf16.msra.mxu0 0
      %896 = vmatprep.mubr.bf16.mxu0 0
      %897 = vmatmul.mubr.bf16.gmra.mrb[0].mxu0 %v795
      %v898 = vpop.f32.mrb[0].mxu0
      %v899 = vadd.f32 0.0, %v898
      %v900 = vpop.f32.mrb[0].mxu0
      %v901 = vpop.f32.mrb[0].mxu0
      %v902 = vadd.f32 0.0, %v901
      %v903 = vpop.f32.mrb[0].mxu0
      %904 = vmatprep.mubr.bf16.mxu0 0
      %905 = vmatmul.mubr.bf16.gmra.mrb[0].mxu0 %v796
      %v906 = vpop.f32.mrb[0].mxu0
      %v907 = vadd.f32 0.0, %v906
      %v908 = vpop.f32.mrb[0].mxu0
      %v909 = vpop.f32.mrb[0].mxu0
      %v910 = vadd.f32 0.0, %v909
      %v911 = vpop.f32.mrb[0].mxu0
      %912 = vmatprep.mubr.bf16.mxu0 0
      %913 = vmatmul.mubr.bf16.gmra.mrb[0].mxu0 %v797
      %v914 = vpop.f32.mrb[0].mxu0
      %v915 = vadd.f32 0.0, %v914
      %v916 = vpop.f32.mrb[0].mxu0
      %v917 = vpop.f32.mrb[0].mxu0
      %v918 = vadd.f32 0.0, %v917
      %v919 = vpop.f32.mrb[0].mxu0
      %920 = vmatprep.mubr.bf16.mxu0 0
      %921 = vmatmul.mubr.bf16.gmra.mrb[0].mxu0 %v798
      %v922 = vpop.f32.mrb[0].mxu0
      %v923 = vadd.f32 0.0, %v922
      %v924 = vpop.f32.mrb[0].mxu0
      %v925 = vpop.f32.mrb[0].mxu0
      %v926 = vadd.f32 0.0, %v925
      %v927 = vpop.f32.mrb[0].mxu0
      %928 = vdwg.mxu0
      %v929 = vadd.f32 %v779, %v899
      %v930 = vadd.f32 %v780, %v902
      %v931 = vadd.f32 %v781, %v907
      %v932 = vadd.f32 %v782, %v910
      %v933 = vadd.f32 %v783, %v915
      %v934 = vadd.f32 %v784, %v918
      %v935 = vadd.f32 %v785, %v923
      %v936 = vadd.f32 %v786, %v926
      %v937 = vld [vmem:[%s329 + $0x1] sm:$0xff]
      %v938 = vld [vmem:[%s329 + $0x11] sm:$0xff]
      %v939 = vld [vmem:[%s329 + $0x21] sm:$0xff]
      %v940 = vld [vmem:[%s329 + $0x31] sm:$0xff]
      %v941 = vld [vmem:[%s329 + $0x41] sm:$0xff]
      %v942 = vld [vmem:[%s329 + $0x51] sm:$0xff]
      %v943 = vld [vmem:[%s329 + $0x61] sm:$0xff]
      %v944 = vld [vmem:[%s329 + $0x71] sm:$0xff]
      %v945 = vpack.c.bf16 %v938, %v937
      %v946 = vpack.c.bf16 %v940, %v939
      %v947 = vpack.c.bf16 %v942, %v941
      %v948 = vpack.c.bf16 %v944, %v943
      %s949 = scalar_lea.vmem %s3, 256
      %v950 = vld [vmem:[%s949] sm:$0xf]
      %v951 = vld [vmem:[%s949 + $0x4] sm:$0xf]
      %v952 = vld [vmem:[%s949 + $0x8] sm:$0xf]
      %v953 = vld [vmem:[%s949 + $0xc] sm:$0xf]
      %v954 = vld [vmem:[%s949 + $0x10] sm:$0xf]
      %v955 = vld [vmem:[%s949 + $0x14] sm:$0xf]
      %v956 = vld [vmem:[%s949 + $0x18] sm:$0xf]
      %v957 = vld [vmem:[%s949 + $0x1c] sm:$0xf]
      %v958 = vld [vmem:[%s949 + $0x20] sm:$0xf]
      %v959 = vld [vmem:[%s949 + $0x24] sm:$0xf]
      %v960 = vld [vmem:[%s949 + $0x28] sm:$0xf]
      %v961 = vld [vmem:[%s949 + $0x2c] sm:$0xf]
      %v962 = vld [vmem:[%s949 + $0x30] sm:$0xf]
      %v963 = vld [vmem:[%s949 + $0x34] sm:$0xf]
      %v964 = vld [vmem:[%s949 + $0x38] sm:$0xf]
      %v965 = vld [vmem:[%s949 + $0x3c] sm:$0xf]
      %v982 = vunpack.c.l.b16 %v950
      %v983 = vunpack.c.l.b16 %v951
      %v984 = vunpack.c.l.b16 %v952
      %v985 = vunpack.c.l.b16 %v953
      %v986 = vunpack.c.l.b16 %v954
      %v987 = vunpack.c.l.b16 %v955
      %v988 = vunpack.c.l.b16 %v956
      %v989 = vunpack.c.l.b16 %v957
      %v990 = vunpack.c.l.b16 %v958
      %v991 = vunpack.c.l.b16 %v959
      %v992 = vunpack.c.l.b16 %v960
      %v993 = vunpack.c.l.b16 %v961
      %v994 = vunpack.c.l.b16 %v962
      %v995 = vunpack.c.l.b16 %v963
      %v996 = vunpack.c.l.b16 %v964
      %v997 = vunpack.c.l.b16 %v965
      %v998 = vpack.c.b16 %v983, %v982
      %v999 = vpack.c.b16 %v985, %v984
      %v1000 = vpack.c.b16 %v987, %v986
      %v1001 = vpack.c.b16 %v989, %v988
      %v1002 = vpack.c.b16 %v991, %v990
      %v1003 = vpack.c.b16 %v993, %v992
      %v1004 = vpack.c.b16 %v995, %v994
      %v1005 = vpack.c.b16 %v997, %v996
      %1014 = vmatprep.subr.bf16.mxu0 0
      %1015 = vmatpush1.bf16.msra.mxu0 %v998
      %1016 = vmatprep.subr.bf16.mxu0 0
      %1017 = vmatpush1.bf16.msra.mxu0 %v999
      %1018 = vmatprep.subr.bf16.mxu0 0
      %1019 = vmatpush1.bf16.msra.mxu0 %v1000
      %1020 = vmatprep.subr.bf16.mxu0 0
      %1021 = vmatpush1.bf16.msra.mxu0 %v1001
      %1022 = vmatprep.subr.bf16.mxu0 0
      %1023 = vmatpush1.bf16.msra.mxu0 %v1002
      %1024 = vmatprep.subr.bf16.mxu0 0
      %1025 = vmatpush1.bf16.msra.mxu0 %v1003
      %1026 = vmatprep.subr.bf16.mxu0 0
      %1027 = vmatpush1.bf16.msra.mxu0 %v1004
      %1028 = vmatprep.subr.bf16.mxu0 0
      %1029 = vmatpush1.bf16.msra.mxu0 %v1005
      %1030 = vmatprep.subr.bf16.mxu0 0
      %1031 = vmatpush1.bf16.msra.mxu0 0
      %1032 = vmatprep.subr.bf16.mxu0 0
      %1033 = vmatpush1.bf16.msra.mxu0 0
      %1034 = vmatprep.subr.bf16.mxu0 0
      %1035 = vmatpush1.bf16.msra.mxu0 0
      %1036 = vmatprep.subr.bf16.mxu0 0
      %1037 = vmatpush1.bf16.msra.mxu0 0
      %1038 = vmatprep.subr.bf16.mxu0 0
      %1039 = vmatpush1.bf16.msra.mxu0 0
      %1040 = vmatprep.subr.bf16.mxu0 0
      %1041 = vmatpush1.bf16.msra.mxu0 0
      %1042 = vmatprep.subr.bf16.mxu0 0
      %1043 = vmatpush1.bf16.msra.mxu0 0
      %1044 = vmatprep.subr.bf16.mxu0 0
      %1045 = vmatpush1.bf16.msra.mxu0 0
      %1046 = vmatprep.mubr.bf16.mxu0 0
      %1047 = vmatmul.mubr.bf16.gmra.mrb[0].mxu0 %v945
      %v1048 = vpop.f32.mrb[0].mxu0
      %v1049 = vadd.f32 0.0, %v1048
      %v1050 = vpop.f32.mrb[0].mxu0
      %v1051 = vpop.f32.mrb[0].mxu0
      %v1052 = vadd.f32 0.0, %v1051
      %v1053 = vpop.f32.mrb[0].mxu0
      %1054 = vmatprep.mubr.bf16.mxu0 0
      %1055 = vmatmul.mubr.bf16.gmra.mrb[0].mxu0 %v946
      %v1056 = vpop.f32.mrb[0].mxu0
      %v1057 = vadd.f32 0.0, %v1056
      %v1058 = vpop.f32.mrb[0].mxu0
      %v1059 = vpop.f32.mrb[0].mxu0
      %v1060 = vadd.f32 0.0, %v1059
      %v1061 = vpop.f32.mrb[0].mxu0
      %1062 = vmatprep.mubr.bf16.mxu0 0
      %1063 = vmatmul.mubr.bf16.gmra.mrb[0].mxu0 %v947
      %v1064 = vpop.f32.mrb[0].mxu0
      %v1065 = vadd.f32 0.0, %v1064
      %v1066 = vpop.f32.mrb[0].mxu0
      %v1067 = vpop.f32.mrb[0].mxu0
      %v1068 = vadd.f32 0.0, %v1067
      %v1069 = vpop.f32.mrb[0].mxu0
      %1070 = vmatprep.mubr.bf16.mxu0 0
      %1071 = vmatmul.mubr.bf16.gmra.mrb[0].mxu0 %v948
      %v1072 = vpop.f32.mrb[0].mxu0
      %v1073 = vadd.f32 0.0, %v1072
      %v1074 = vpop.f32.mrb[0].mxu0
      %v1075 = vpop.f32.mrb[0].mxu0
      %v1076 = vadd.f32 0.0, %v1075
      %v1077 = vpop.f32.mrb[0].mxu0
      %1078 = vdwg.mxu0
      %v1079 = vadd.f32 %v929, %v1049
      %v1080 = vadd.f32 %v930, %v1052
      %v1081 = vadd.f32 %v931, %v1057
      %v1082 = vadd.f32 %v932, %v1060
      %v1083 = vadd.f32 %v933, %v1065
      %v1084 = vadd.f32 %v934, %v1068
      %v1085 = vadd.f32 %v935, %v1073
      %v1086 = vadd.f32 %v936, %v1076
      %v1087 = vld [vmem:[%s329 + $0x2] sm:$0xff]
      %v1088 = vld [vmem:[%s329 + $0x12] sm:$0xff]
      %v1089 = vld [vmem:[%s329 + $0x22] sm:$0xff]
      %v1090 = vld [vmem:[%s329 + $0x32] sm:$0xff]
      %v1091 = vld [vmem:[%s329 + $0x42] sm:$0xff]
      %v1092 = vld [vmem:[%s329 + $0x52] sm:$0xff]
      %v1093 = vld [vmem:[%s329 + $0x62] sm:$0xff]
      %v1094 = vld [vmem:[%s329 + $0x72] sm:$0xff]
      %v1095 = vpack.c.bf16 %v1088, %v1087
      %v1096 = vpack.c.bf16 %v1090, %v1089
      %v1097 = vpack.c.bf16 %v1092, %v1091
      %v1098 = vpack.c.bf16 %v1094, %v1093
      %s1099 = scalar_lea.vmem %s3, 320
      %v1100 = vld [vmem:[%s1099] sm:$0xf]
      %v1101 = vld [vmem:[%s1099 + $0x4] sm:$0xf]
      %v1102 = vld [vmem:[%s1099 + $0x8] sm:$0xf]
      %v1103 = vld [vmem:[%s1099 + $0xc] sm:$0xf]
      %v1104 = vld [vmem:[%s1099 + $0x10] sm:$0xf]
      %v1105 = vld [vmem:[%s1099 + $0x14] sm:$0xf]
      %v1106 = vld [vmem:[%s1099 + $0x18] sm:$0xf]
      %v1107 = vld [vmem:[%s1099 + $0x1c] sm:$0xf]
      %v1108 = vld [vmem:[%s1099 + $0x20] sm:$0xf]
      %v1109 = vld [vmem:[%s1099 + $0x24] sm:$0xf]
      %v1110 = vld [vmem:[%s1099 + $0x28] sm:$0xf]
      %v1111 = vld [vmem:[%s1099 + $0x2c] sm:$0xf]
      %v1112 = vld [vmem:[%s1099 + $0x30] sm:$0xf]
      %v1113 = vld [vmem:[%s1099 + $0x34] sm:$0xf]
      %v1114 = vld [vmem:[%s1099 + $0x38] sm:$0xf]
      %v1115 = vld [vmem:[%s1099 + $0x3c] sm:$0xf]
      %v1132 = vunpack.c.l.b16 %v1100
      %v1133 = vunpack.c.l.b16 %v1101
      %v1134 = vunpack.c.l.b16 %v1102
      %v1135 = vunpack.c.l.b16 %v1103
      %v1136 = vunpack.c.l.b16 %v1104
      %v1137 = vunpack.c.l.b16 %v1105
      %v1138 = vunpack.c.l.b16 %v1106
      %v1139 = vunpack.c.l.b16 %v1107
      %v1140 = vunpack.c.l.b16 %v1108
      %v1141 = vunpack.c.l.b16 %v1109
      %v1142 = vunpack.c.l.b16 %v1110
      %v1143 = vunpack.c.l.b16 %v1111
      %v1144 = vunpack.c.l.b16 %v1112
      %v1145 = vunpack.c.l.b16 %v1113
      %v1146 = vunpack.c.l.b16 %v1114
      %v1147 = vunpack.c.l.b16 %v1115
      %v1148 = vpack.c.b16 %v1133, %v1132
      %v1149 = vpack.c.b16 %v1135, %v1134
      %v1150 = vpack.c.b16 %v1137, %v1136
      %v1151 = vpack.c.b16 %v1139, %v1138
      %v1152 = vpack.c.b16 %v1141, %v1140
      %v1153 = vpack.c.b16 %v1143, %v1142
      %v1154 = vpack.c.b16 %v1145, %v1144
      %v1155 = vpack.c.b16 %v1147, %v1146
      %1164 = vmatprep.subr.bf16.mxu0 0
      %1165 = vmatpush1.bf16.msra.mxu0 %v1148
      %1166 = vmatprep.subr.bf16.mxu0 0
      %1167 = vmatpush1.bf16.msra.mxu0 %v1149
      %1168 = vmatprep.subr.bf16.mxu0 0
      %1169 = vmatpush1.bf16.msra.mxu0 %v1150
      %1170 = vmatprep.subr.bf16.mxu0 0
      %1171 = vmatpush1.bf16.msra.mxu0 %v1151
      %1172 = vmatprep.subr.bf16.mxu0 0
      %1173 = vmatpush1.bf16.msra.mxu0 %v1152
      %1174 = vmatprep.subr.bf16.mxu0 0
      %1175 = vmatpush1.bf16.msra.mxu0 %v1153
      %1176 = vmatprep.subr.bf16.mxu0 0
      %1177 = vmatpush1.bf16.msra.mxu0 %v1154
      %1178 = vmatprep.subr.bf16.mxu0 0
      %1179 = vmatpush1.bf16.msra.mxu0 %v1155
      %1180 = vmatprep.subr.bf16.mxu0 0
      %1181 = vmatpush1.bf16.msra.mxu0 0
      %1182 = vmatprep.subr.bf16.mxu0 0
      %1183 = vmatpush1.bf16.msra.mxu0 0
      %1184 = vmatprep.subr.bf16.mxu0 0
      %1185 = vmatpush1.bf16.msra.mxu0 0
      %1186 = vmatprep.subr.bf16.mxu0 0
      %1187 = vmatpush1.bf16.msra.mxu0 0
      %1188 = vmatprep.subr.bf16.mxu0 0
      %1189 = vmatpush1.bf16.msra.mxu0 0
      %1190 = vmatprep.subr.bf16.mxu0 0
      %1191 = vmatpush1.bf16.msra.mxu0 0
      %1192 = vmatprep.subr.bf16.mxu0 0
      %1193 = vmatpush1.bf16.msra.mxu0 0
      %1194 = vmatprep.subr.bf16.mxu0 0
      %1195 = vmatpush1.bf16.msra.mxu0 0
      %1196 = vmatprep.mubr.bf16.mxu0 0
      %1197 = vmatmul.mubr.bf16.gmra.mrb[0].mxu0 %v1095
      %v1198 = vpop.f32.mrb[0].mxu0
      %v1199 = vadd.f32 0.0, %v1198
      %v1200 = vpop.f32.mrb[0].mxu0
      %v1201 = vpop.f32.mrb[0].mxu0
      %v1202 = vadd.f32 0.0, %v1201
      %v1203 = vpop.f32.mrb[0].mxu0
      %1204 = vmatprep.mubr.bf16.mxu0 0
      %1205 = vmatmul.mubr.bf16.gmra.mrb[0].mxu0 %v1096
      %v1206 = vpop.f32.mrb[0].mxu0
      %v1207 = vadd.f32 0.0, %v1206
      %v1208 = vpop.f32.mrb[0].mxu0
      %v1209 = vpop.f32.mrb[0].mxu0
      %v1210 = vadd.f32 0.0, %v1209
      %v1211 = vpop.f32.mrb[0].mxu0
      %1212 = vmatprep.mubr.bf16.mxu0 0
      %1213 = vmatmul.mubr.bf16.gmra.mrb[0].mxu0 %v1097
      %v1214 = vpop.f32.mrb[0].mxu0
      %v1215 = vadd.f32 0.0, %v1214
      %v1216 = vpop.f32.mrb[0].mxu0
      %v1217 = vpop.f32.mrb[0].mxu0
      %v1218 = vadd.f32 0.0, %v1217
      %v1219 = vpop.f32.mrb[0].mxu0
      %1220 = vmatprep.mubr.bf16.mxu0 0
      %1221 = vmatmul.mubr.bf16.gmra.mrb[0].mxu0 %v1098
      %v1222 = vpop.f32.mrb[0].mxu0
      %v1223 = vadd.f32 0.0, %v1222
      %v1224 = vpop.f32.mrb[0].mxu0
      %v1225 = vpop.f32.mrb[0].mxu0
      %v1226 = vadd.f32 0.0, %v1225
      %v1227 = vpop.f32.mrb[0].mxu0
      %1228 = vdwg.mxu0
      %v1229 = vadd.f32 %v1079, %v1199
      %v1230 = vadd.f32 %v1080, %v1202
      %v1231 = vadd.f32 %v1081, %v1207
      %v1232 = vadd.f32 %v1082, %v1210
      %v1233 = vadd.f32 %v1083, %v1215
      %v1234 = vadd.f32 %v1084, %v1218
      %v1235 = vadd.f32 %v1085, %v1223
      %v1236 = vadd.f32 %v1086, %v1226
      %s1237 = scalar_lea.vmem [#allocation2], 32
      %v1238 = vld [vmem:[%s1237] sm:$0xff]
      %v1239 = vld [vmem:[%s1237 + $0x10] sm:$0xff]
      %v1240 = vld [vmem:[%s1237 + $0x20] sm:$0xff]
      %v1241 = vld [vmem:[%s1237 + $0x30] sm:$0xff]
      %v1242 = vld [vmem:[%s1237 + $0x40] sm:$0xff]
      %v1243 = vld [vmem:[%s1237 + $0x50] sm:$0xff]
      %v1244 = vld [vmem:[%s1237 + $0x60] sm:$0xff]
      %v1245 = vld [vmem:[%s1237 + $0x70] sm:$0xff]
      %v1246 = vpack.c.bf16 %v1239, %v1238
      %v1247 = vpack.c.bf16 %v1241, %v1240
      %v1248 = vpack.c.bf16 %v1243, %v1242
      %v1249 = vpack.c.bf16 %v1245, %v1244
      %s1250 = scalar_lea.vmem %s3, 384
      %v1251 = vld [vmem:[%s1250] sm:$0xf]
      %v1252 = vld [vmem:[%s1250 + $0x4] sm:$0xf]
      %v1253 = vld [vmem:[%s1250 + $0x8] sm:$0xf]
      %v1254 = vld [vmem:[%s1250 + $0xc] sm:$0xf]
      %v1255 = vld [vmem:[%s1250 + $0x10] sm:$0xf]
      %v1256 = vld [vmem:[%s1250 + $0x14] sm:$0xf]
      %v1257 = vld [vmem:[%s1250 + $0x18] sm:$0xf]
      %v1258 = vld [vmem:[%s1250 + $0x1c] sm:$0xf]
      %v1259 = vld [vmem:[%s1250 + $0x20] sm:$0xf]
      %v1260 = vld [vmem:[%s1250 + $0x24] sm:$0xf]
      %v1261 = vld [vmem:[%s1250 + $0x28] sm:$0xf]
      %v1262 = vld [vmem:[%s1250 + $0x2c] sm:$0xf]
      %v1263 = vld [vmem:[%s1250 + $0x30] sm:$0xf]
      %v1264 = vld [vmem:[%s1250 + $0x34] sm:$0xf]
      %v1265 = vld [vmem:[%s1250 + $0x38] sm:$0xf]
      %v1266 = vld [vmem:[%s1250 + $0x3c] sm:$0xf]
      %v1283 = vunpack.c.l.b16 %v1251
      %v1284 = vunpack.c.l.b16 %v1252
      %v1285 = vunpack.c.l.b16 %v1253
      %v1286 = vunpack.c.l.b16 %v1254
      %v1287 = vunpack.c.l.b16 %v1255
      %v1288 = vunpack.c.l.b16 %v1256
      %v1289 = vunpack.c.l.b16 %v1257
      %v1290 = vunpack.c.l.b16 %v1258
      %v1291 = vunpack.c.l.b16 %v1259
      %v1292 = vunpack.c.l.b16 %v1260
      %v1293 = vunpack.c.l.b16 %v1261
      %v1294 = vunpack.c.l.b16 %v1262
      %v1295 = vunpack.c.l.b16 %v1263
      %v1296 = vunpack.c.l.b16 %v1264
      %v1297 = vunpack.c.l.b16 %v1265
      %v1298 = vunpack.c.l.b16 %v1266
      %v1299 = vpack.c.b16 %v1284, %v1283
      %v1300 = vpack.c.b16 %v1286, %v1285
      %v1301 = vpack.c.b16 %v1288, %v1287
      %v1302 = vpack.c.b16 %v1290, %v1289
      %v1303 = vpack.c.b16 %v1292, %v1291
      %v1304 = vpack.c.b16 %v1294, %v1293
      %v1305 = vpack.c.b16 %v1296, %v1295
      %v1306 = vpack.c.b16 %v1298, %v1297
      %1315 = vmatprep.subr.bf16.mxu0 0
      %1316 = vmatpush1.bf16.msra.mxu0 %v1299
      %1317 = vmatprep.subr.bf16.mxu0 0
      %1318 = vmatpush1.bf16.msra.mxu0 %v1300
      %1319 = vmatprep.subr.bf16.mxu0 0
      %1320 = vmatpush1.bf16.msra.mxu0 %v1301
      %1321 = vmatprep.subr.bf16.mxu0 0
      %1322 = vmatpush1.bf16.msra.mxu0 %v1302
      %1323 = vmatprep.subr.bf16.mxu0 0
      %1324 = vmatpush1.bf16.msra.mxu0 %v1303
      %1325 = vmatprep.subr.bf16.mxu0 0
      %1326 = vmatpush1.bf16.msra.mxu0 %v1304
      %1327 = vmatprep.subr.bf16.mxu0 0
      %1328 = vmatpush1.bf16.msra.mxu0 %v1305
      %1329 = vmatprep.subr.bf16.mxu0 0
      %1330 = vmatpush1.bf16.msra.mxu0 %v1306
      %1331 = vmatprep.subr.bf16.mxu0 0
      %1332 = vmatpush1.bf16.msra.mxu0 0
      %1333 = vmatprep.subr.bf16.mxu0 0
      %1334 = vmatpush1.bf16.msra.mxu0 0
      %1335 = vmatprep.subr.bf16.mxu0 0
      %1336 = vmatpush1.bf16.msra.mxu0 0
      %1337 = vmatprep.subr.bf16.mxu0 0
      %1338 = vmatpush1.bf16.msra.mxu0 0
      %1339 = vmatprep.subr.bf16.mxu0 0
      %1340 = vmatpush1.bf16.msra.mxu0 0
      %1341 = vmatprep.subr.bf16.mxu0 0
      %1342 = vmatpush1.bf16.msra.mxu0 0
      %1343 = vmatprep.subr.bf16.mxu0 0
      %1344 = vmatpush1.bf16.msra.mxu0 0
      %1345 = vmatprep.subr.bf16.mxu0 0
      %1346 = vmatpush1.bf16.msra.mxu0 0
      %1347 = vmatprep.mubr.bf16.mxu0 0
      %1348 = vmatmul.mubr.bf16.gmra.mrb[0].mxu0 %v1246
      %v1349 = vpop.f32.mrb[0].mxu0
      %v1350 = vadd.f32 0.0, %v1349
      %v1351 = vpop.f32.mrb[0].mxu0
      %v1352 = vpop.f32.mrb[0].mxu0
      %v1353 = vadd.f32 0.0, %v1352
      %v1354 = vpop.f32.mrb[0].mxu0
      %1355 = vmatprep.mubr.bf16.mxu0 0
      %1356 = vmatmul.mubr.bf16.gmra.mrb[0].mxu0 %v1247
      %v1357 = vpop.f32.mrb[0].mxu0
      %v1358 = vadd.f32 0.0, %v1357
      %v1359 = vpop.f32.mrb[0].mxu0
      %v1360 = vpop.f32.mrb[0].mxu0
      %v1361 = vadd.f32 0.0, %v1360
      %v1362 = vpop.f32.mrb[0].mxu0
      %1363 = vmatprep.mubr.bf16.mxu0 0
      %1364 = vmatmul.mubr.bf16.gmra.mrb[0].mxu0 %v1248
      %v1365 = vpop.f32.mrb[0].mxu0
      %v1366 = vadd.f32 0.0, %v1365
      %v1367 = vpop.f32.mrb[0].mxu0
      %v1368 = vpop.f32.mrb[0].mxu0
      %v1369 = vadd.f32 0.0, %v1368
      %v1370 = vpop.f32.mrb[0].mxu0
      %1371 = vmatprep.mubr.bf16.mxu0 0
      %1372 = vmatmul.mubr.bf16.gmra.mrb[0].mxu0 %v1249
      %v1373 = vpop.f32.mrb[0].mxu0
      %v1374 = vadd.f32 0.0, %v1373
      %v1375 = vpop.f32.mrb[0].mxu0
      %v1376 = vpop.f32.mrb[0].mxu0
      %v1377 = vadd.f32 0.0, %v1376
      %v1378 = vpop.f32.mrb[0].mxu0
      %1379 = vdwg.mxu0
      %v1380 = vadd.f32 %v1229, %v1350
      %v1381 = vadd.f32 %v1230, %v1353
      %v1382 = vadd.f32 %v1231, %v1358
      %v1383 = vadd.f32 %v1232, %v1361
      %v1384 = vadd.f32 %v1233, %v1366
      %v1385 = vadd.f32 %v1234, %v1369
      %v1386 = vadd.f32 %v1235, %v1374
      %v1387 = vadd.f32 %v1236, %v1377
      %v1388 = vld [vmem:[%s1237 + $0x1] sm:$0xff]
      %v1389 = vld [vmem:[%s1237 + $0x11] sm:$0xff]
      %v1390 = vld [vmem:[%s1237 + $0x21] sm:$0xff]
      %v1391 = vld [vmem:[%s1237 + $0x31] sm:$0xff]
      %v1392 = vld [vmem:[%s1237 + $0x41] sm:$0xff]
      %v1393 = vld [vmem:[%s1237 + $0x51] sm:$0xff]
      %v1394 = vld [vmem:[%s1237 + $0x61] sm:$0xff]
      %v1395 = vld [vmem:[%s1237 + $0x71] sm:$0xff]
      %v1396 = vpack.c.bf16 %v1389, %v1388
      %v1397 = vpack.c.bf16 %v1391, %v1390
      %v1398 = vpack.c.bf16 %v1393, %v1392
      %v1399 = vpack.c.bf16 %v1395, %v1394
      %s1400 = scalar_lea.vmem %s3, 448
      %v1401 = vld [vmem:[%s1400] sm:$0xf]
      %v1402 = vld [vmem:[%s1400 + $0x4] sm:$0xf]
      %v1403 = vld [vmem:[%s1400 + $0x8] sm:$0xf]
      %v1404 = vld [vmem:[%s1400 + $0xc] sm:$0xf]
      %v1405 = vld [vmem:[%s1400 + $0x10] sm:$0xf]
      %v1406 = vld [vmem:[%s1400 + $0x14] sm:$0xf]
      %v1407 = vld [vmem:[%s1400 + $0x18] sm:$0xf]
      %v1408 = vld [vmem:[%s1400 + $0x1c] sm:$0xf]
      %v1409 = vld [vmem:[%s1400 + $0x20] sm:$0xf]
      %v1410 = vld [vmem:[%s1400 + $0x24] sm:$0xf]
      %v1411 = vld [vmem:[%s1400 + $0x28] sm:$0xf]
      %v1412 = vld [vmem:[%s1400 + $0x2c] sm:$0xf]
      %v1413 = vld [vmem:[%s1400 + $0x30] sm:$0xf]
      %v1414 = vld [vmem:[%s1400 + $0x34] sm:$0xf]
      %v1415 = vld [vmem:[%s1400 + $0x38] sm:$0xf]
      %v1416 = vld [vmem:[%s1400 + $0x3c] sm:$0xf]
      %v1433 = vunpack.c.l.b16 %v1401
      %v1434 = vunpack.c.l.b16 %v1402
      %v1435 = vunpack.c.l.b16 %v1403
      %v1436 = vunpack.c.l.b16 %v1404
      %v1437 = vunpack.c.l.b16 %v1405
      %v1438 = vunpack.c.l.b16 %v1406
      %v1439 = vunpack.c.l.b16 %v1407
      %v1440 = vunpack.c.l.b16 %v1408
      %v1441 = vunpack.c.l.b16 %v1409
      %v1442 = vunpack.c.l.b16 %v1410
      %v1443 = vunpack.c.l.b16 %v1411
      %v1444 = vunpack.c.l.b16 %v1412
      %v1445 = vunpack.c.l.b16 %v1413
      %v1446 = vunpack.c.l.b16 %v1414
      %v1447 = vunpack.c.l.b16 %v1415
      %v1448 = vunpack.c.l.b16 %v1416
      %v1449 = vpack.c.b16 %v1434, %v1433
      %v1450 = vpack.c.b16 %v1436, %v1435
      %v1451 = vpack.c.b16 %v1438, %v1437
      %v1452 = vpack.c.b16 %v1440, %v1439
      %v1453 = vpack.c.b16 %v1442, %v1441
      %v1454 = vpack.c.b16 %v1444, %v1443
      %v1455 = vpack.c.b16 %v1446, %v1445
      %v1456 = vpack.c.b16 %v1448, %v1447
      %1465 = vmatprep.subr.bf16.mxu0 0
      %1466 = vmatpush1.bf16.msra.mxu0 %v1449
      %1467 = vmatprep.subr.bf16.mxu0 0
      %1468 = vmatpush1.bf16.msra.mxu0 %v1450
      %1469 = vmatprep.subr.bf16.mxu0 0
      %1470 = vmatpush1.bf16.msra.mxu0 %v1451
      %1471 = vmatprep.subr.bf16.mxu0 0
      %1472 = vmatpush1.bf16.msra.mxu0 %v1452
      %1473 = vmatprep.subr.bf16.mxu0 0
      %1474 = vmatpush1.bf16.msra.mxu0 %v1453
      %1475 = vmatprep.subr.bf16.mxu0 0
      %1476 = vmatpush1.bf16.msra.mxu0 %v1454
      %1477 = vmatprep.subr.bf16.mxu0 0
      %1478 = vmatpush1.bf16.msra.mxu0 %v1455
      %1479 = vmatprep.subr.bf16.mxu0 0
      %1480 = vmatpush1.bf16.msra.mxu0 %v1456
      %1481 = vmatprep.subr.bf16.mxu0 0
      %1482 = vmatpush1.bf16.msra.mxu0 0
      %1483 = vmatprep.subr.bf16.mxu0 0
      %1484 = vmatpush1.bf16.msra.mxu0 0
      %1485 = vmatprep.subr.bf16.mxu0 0
      %1486 = vmatpush1.bf16.msra.mxu0 0
      %1487 = vmatprep.subr.bf16.mxu0 0
      %1488 = vmatpush1.bf16.msra.mxu0 0
      %1489 = vmatprep.subr.bf16.mxu0 0
      %1490 = vmatpush1.bf16.msra.mxu0 0
      %1491 = vmatprep.subr.bf16.mxu0 0
      %1492 = vmatpush1.bf16.msra.mxu0 0
      %1493 = vmatprep.subr.bf16.mxu0 0
      %1494 = vmatpush1.bf16.msra.mxu0 0
      %1495 = vmatprep.subr.bf16.mxu0 0
      %1496 = vmatpush1.bf16.msra.mxu0 0
      %1497 = vmatprep.mubr.bf16.mxu0 0
      %1498 = vmatmul.mubr.bf16.gmra.mrb[0].mxu0 %v1396
      %v1499 = vpop.f32.mrb[0].mxu0
      %v1500 = vadd.f32 0.0, %v1499
      %v1501 = vpop.f32.mrb[0].mxu0
      %v1502 = vpop.f32.mrb[0].mxu0
      %v1503 = vadd.f32 0.0, %v1502
      %v1504 = vpop.f32.mrb[0].mxu0
      %1505 = vmatprep.mubr.bf16.mxu0 0
      %1506 = vmatmul.mubr.bf16.gmra.mrb[0].mxu0 %v1397
      %v1507 = vpop.f32.mrb[0].mxu0
      %v1508 = vadd.f32 0.0, %v1507
      %v1509 = vpop.f32.mrb[0].mxu0
      %v1510 = vpop.f32.mrb[0].mxu0
      %v1511 = vadd.f32 0.0, %v1510
      %v1512 = vpop.f32.mrb[0].mxu0
      %1513 = vmatprep.mubr.bf16.mxu0 0
      %1514 = vmatmul.mubr.bf16.gmra.mrb[0].mxu0 %v1398
      %v1515 = vpop.f32.mrb[0].mxu0
      %v1516 = vadd.f32 0.0, %v1515
      %v1517 = vpop.f32.mrb[0].mxu0
      %v1518 = vpop.f32.mrb[0].mxu0
      %v1519 = vadd.f32 0.0, %v1518
      %v1520 = vpop.f32.mrb[0].mxu0
      %1521 = vmatprep.mubr.bf16.mxu0 0
      %1522 = vmatmul.mubr.bf16.gmra.mrb[0].mxu0 %v1399
      %v1523 = vpop.f32.mrb[0].mxu0
      %v1524 = vadd.f32 0.0, %v1523
      %v1525 = vpop.f32.mrb[0].mxu0
      %v1526 = vpop.f32.mrb[0].mxu0
      %v1527 = vadd.f32 0.0, %v1526
      %v1528 = vpop.f32.mrb[0].mxu0
      %1529 = vdwg.mxu0
      %v1530 = vadd.f32 %v1380, %v1500
      %v1531 = vadd.f32 %v1381, %v1503
      %v1532 = vadd.f32 %v1382, %v1508
      %v1533 = vadd.f32 %v1383, %v1511
      %v1534 = vadd.f32 %v1384, %v1516
      %v1535 = vadd.f32 %v1385, %v1519
      %v1536 = vadd.f32 %v1386, %v1524
      %v1537 = vadd.f32 %v1387, %v1527
      %v1538 = vld [vmem:[%s1237 + $0x2] sm:$0xff]
      %v1539 = vld [vmem:[%s1237 + $0x12] sm:$0xff]
      %v1540 = vld [vmem:[%s1237 + $0x22] sm:$0xff]
      %v1541 = vld [vmem:[%s1237 + $0x32] sm:$0xff]
      %v1542 = vld [vmem:[%s1237 + $0x42] sm:$0xff]
      %v1543 = vld [vmem:[%s1237 + $0x52] sm:$0xff]
      %v1544 = vld [vmem:[%s1237 + $0x62] sm:$0xff]
      %v1545 = vld [vmem:[%s1237 + $0x72] sm:$0xff]
      %v1546 = vpack.c.bf16 %v1539, %v1538
      %v1547 = vpack.c.bf16 %v1541, %v1540
      %v1548 = vpack.c.bf16 %v1543, %v1542
      %v1549 = vpack.c.bf16 %v1545, %v1544
      %s1550 = scalar_lea.vmem %s3, 512
      %v1551 = vld [vmem:[%s1550] sm:$0xf]
      %v1552 = vld [vmem:[%s1550 + $0x4] sm:$0xf]
      %v1553 = vld [vmem:[%s1550 + $0x8] sm:$0xf]
      %v1554 = vld [vmem:[%s1550 + $0xc] sm:$0xf]
      %v1555 = vld [vmem:[%s1550 + $0x10] sm:$0xf]
      %v1556 = vld [vmem:[%s1550 + $0x14] sm:$0xf]
      %v1557 = vld [vmem:[%s1550 + $0x18] sm:$0xf]
      %v1558 = vld [vmem:[%s1550 + $0x1c] sm:$0xf]
      %v1559 = vld [vmem:[%s1550 + $0x20] sm:$0xf]
      %v1560 = vld [vmem:[%s1550 + $0x24] sm:$0xf]
      %v1561 = vld [vmem:[%s1550 + $0x28] sm:$0xf]
      %v1562 = vld [vmem:[%s1550 + $0x2c] sm:$0xf]
      %v1563 = vld [vmem:[%s1550 + $0x30] sm:$0xf]
      %v1564 = vld [vmem:[%s1550 + $0x34] sm:$0xf]
      %v1565 = vld [vmem:[%s1550 + $0x38] sm:$0xf]
      %v1566 = vld [vmem:[%s1550 + $0x3c] sm:$0xf]
      %v1583 = vunpack.c.l.b16 %v1551
      %v1584 = vunpack.c.l.b16 %v1552
      %v1585 = vunpack.c.l.b16 %v1553
      %v1586 = vunpack.c.l.b16 %v1554
      %v1587 = vunpack.c.l.b16 %v1555
      %v1588 = vunpack.c.l.b16 %v1556
      %v1589 = vunpack.c.l.b16 %v1557
      %v1590 = vunpack.c.l.b16 %v1558
      %v1591 = vunpack.c.l.b16 %v1559
      %v1592 = vunpack.c.l.b16 %v1560
      %v1593 = vunpack.c.l.b16 %v1561
      %v1594 = vunpack.c.l.b16 %v1562
      %v1595 = vunpack.c.l.b16 %v1563
      %v1596 = vunpack.c.l.b16 %v1564
      %v1597 = vunpack.c.l.b16 %v1565
      %v1598 = vunpack.c.l.b16 %v1566
      %v1599 = vpack.c.b16 %v1584, %v1583
      %v1600 = vpack.c.b16 %v1586, %v1585
      %v1601 = vpack.c.b16 %v1588, %v1587
      %v1602 = vpack.c.b16 %v1590, %v1589
      %v1603 = vpack.c.b16 %v1592, %v1591
      %v1604 = vpack.c.b16 %v1594, %v1593
      %v1605 = vpack.c.b16 %v1596, %v1595
      %v1606 = vpack.c.b16 %v1598, %v1597
      %1615 = vmatprep.subr.bf16.mxu0 0
      %1616 = vmatpush1.bf16.msra.mxu0 %v1599
      %1617 = vmatprep.subr.bf16.mxu0 0
      %1618 = vmatpush1.bf16.msra.mxu0 %v1600
      %1619 = vmatprep.subr.bf16.mxu0 0
      %1620 = vmatpush1.bf16.msra.mxu0 %v1601
      %1621 = vmatprep.subr.bf16.mxu0 0
      %1622 = vmatpush1.bf16.msra.mxu0 %v1602
      %1623 = vmatprep.subr.bf16.mxu0 0
      %1624 = vmatpush1.bf16.msra.mxu0 %v1603
      %1625 = vmatprep.subr.bf16.mxu0 0
      %1626 = vmatpush1.bf16.msra.mxu0 %v1604
      %1627 = vmatprep.subr.bf16.mxu0 0
      %1628 = vmatpush1.bf16.msra.mxu0 %v1605
      %1629 = vmatprep.subr.bf16.mxu0 0
      %1630 = vmatpush1.bf16.msra.mxu0 %v1606
      %1631 = vmatprep.subr.bf16.mxu0 0
      %1632 = vmatpush1.bf16.msra.mxu0 0
      %1633 = vmatprep.subr.bf16.mxu0 0
      %1634 = vmatpush1.bf16.msra.mxu0 0
      %1635 = vmatprep.subr.bf16.mxu0 0
      %1636 = vmatpush1.bf16.msra.mxu0 0
      %1637 = vmatprep.subr.bf16.mxu0 0
      %1638 = vmatpush1.bf16.msra.mxu0 0
      %1639 = vmatprep.subr.bf16.mxu0 0
      %1640 = vmatpush1.bf16.msra.mxu0 0
      %1641 = vmatprep.subr.bf16.mxu0 0
      %1642 = vmatpush1.bf16.msra.mxu0 0
      %1643 = vmatprep.subr.bf16.mxu0 0
      %1644 = vmatpush1.bf16.msra.mxu0 0
      %1645 = vmatprep.subr.bf16.mxu0 0
      %1646 = vmatpush1.bf16.msra.mxu0 0
      %1647 = vmatprep.mubr.bf16.mxu0 0
      %1648 = vmatmul.mubr.bf16.gmra.mrb[0].mxu0 %v1546
      %v1649 = vpop.f32.mrb[0].mxu0
      %v1650 = vadd.f32 0.0, %v1649
      %v1651 = vpop.f32.mrb[0].mxu0
      %v1652 = vpop.f32.mrb[0].mxu0
      %v1653 = vadd.f32 0.0, %v1652
      %v1654 = vpop.f32.mrb[0].mxu0
      %1655 = vmatprep.mubr.bf16.mxu0 0
      %1656 = vmatmul.mubr.bf16.gmra.mrb[0].mxu0 %v1547
      %v1657 = vpop.f32.mrb[0].mxu0
      %v1658 = vadd.f32 0.0, %v1657
      %v1659 = vpop.f32.mrb[0].mxu0
      %v1660 = vpop.f32.mrb[0].mxu0
      %v1661 = vadd.f32 0.0, %v1660
      %v1662 = vpop.f32.mrb[0].mxu0
      %1663 = vmatprep.mubr.bf16.mxu0 0
      %1664 = vmatmul.mubr.bf16.gmra.mrb[0].mxu0 %v1548
      %v1665 = vpop.f32.mrb[0].mxu0
      %v1666 = vadd.f32 0.0, %v1665
      %v1667 = vpop.f32.mrb[0].mxu0
      %v1668 = vpop.f32.mrb[0].mxu0
      %v1669 = vadd.f32 0.0, %v1668
      %v1670 = vpop.f32.mrb[0].mxu0
      %1671 = vmatprep.mubr.bf16.mxu0 0
      %1672 = vmatmul.mubr.bf16.gmra.mrb[0].mxu0 %v1549
      %v1673 = vpop.f32.mrb[0].mxu0
      %v1674 = vadd.f32 0.0, %v1673
      %v1675 = vpop.f32.mrb[0].mxu0
      %v1676 = vpop.f32.mrb[0].mxu0
      %v1677 = vadd.f32 0.0, %v1676
      %v1678 = vpop.f32.mrb[0].mxu0
      %1679 = vdwg.mxu0
      %v1680 = vadd.f32 %v1530, %v1650
      %v1681 = vadd.f32 %v1531, %v1653
      %v1682 = vadd.f32 %v1532, %v1658
      %v1683 = vadd.f32 %v1533, %v1661
      %v1684 = vadd.f32 %v1534, %v1666
      %v1685 = vadd.f32 %v1535, %v1669
      %v1686 = vadd.f32 %v1536, %v1674
      %v1687 = vadd.f32 %v1537, %v1677
      %v1688 = vpack.c.bf16 %v1681, %v1680
      %v1689 = vpack.c.bf16 %v1683, %v1682
      %v1690 = vpack.c.bf16 %v1685, %v1684
      %v1691 = vpack.c.bf16 %v1687, %v1686
      %v1696 = vunpack.c.l.b16 %v1688
      %v1697 = vunpack.c.h.b16 %v1688
      %v1698 = vunpack.c.l.b16 %v1689
      %v1699 = vunpack.c.h.b16 %v1689
      %v1700 = vunpack.c.l.b16 %v1690
      %v1701 = vunpack.c.h.b16 %v1690
      %v1702 = vunpack.c.l.b16 %v1691
      %v1703 = vunpack.c.h.b16 %v1691
      %v1704 = vpack.c.b16 %v1696, %v1696
      %v1705 = vpack.c.b16 %v1697, %v1697
      %v1706 = vpack.c.b16 %v1698, %v1698
      %v1707 = vpack.c.b16 %v1699, %v1699
      %v1708 = vpack.c.b16 %v1700, %v1700
      %v1709 = vpack.c.b16 %v1701, %v1701
      %v1710 = vpack.c.b16 %v1702, %v1702
      %v1711 = vpack.c.b16 %v1703, %v1703
      %1720 = vst [vmem:[%s262] sm:$0xf] %v1704
      %1721 = vst [vmem:[%s262 + $0x4] sm:$0xf] %v1705
      %1722 = vst [vmem:[%s262 + $0x8] sm:$0xf] %v1706
      %1723 = vst [vmem:[%s262 + $0xc] sm:$0xf] %v1707
      %1724 = vst [vmem:[%s262 + $0x10] sm:$0xf] %v1708
      %1725 = vst [vmem:[%s262 + $0x14] sm:$0xf] %v1709
      %1726 = vst [vmem:[%s262 + $0x18] sm:$0xf] %v1710
      %1727 = vst [vmem:[%s262 + $0x1c] sm:$0xf] %v1711
      %v1728 = vadd.f32 %v1680, %v1681
      %v1729 = vadd.f32 %v1728, %v1682
      %v1730 = vadd.f32 %v1729, %v1683
      %v1731 = vadd.f32 %v1730, %v1684
      %v1732 = vadd.f32 %v1731, %v1685
      %v1733 = vadd.f32 %v1732, %v1686
      %v1734 = vadd.f32 %v1733, %v1687
      %v1735 = vrot.slane %v1734, 4
      %v1736 = vadd.f32 %v1734, %v1735
      %v1737 = vrot.slane %v1736, 2
      %v1738 = vadd.f32 %v1736, %v1737
      %v1739 = vrot.slane %v1738, 1
      %v1740 = vadd.f32 %v1738, %v1739
      %1741 = vst [vmem:[%s265] sm:$0x1] %v1740
      %v1742 = vmul.f32 %v1680, %v1680
      %v1743 = vmul.f32 %v1681, %v1681
      %v1744 = vmul.f32 %v1682, %v1682
      %v1745 = vmul.f32 %v1683, %v1683
      %v1746 = vmul.f32 %v1684, %v1684
      %v1747 = vmul.f32 %v1685, %v1685
      %v1748 = vmul.f32 %v1686, %v1686
      %v1749 = vmul.f32 %v1687, %v1687
      %v1750 = vadd.f32 %v1742, %v1743
      %v1751 = vadd.f32 %v1750, %v1744
      %v1752 = vadd.f32 %v1751, %v1745
      %v1753 = vadd.f32 %v1752, %v1746
      %v1754 = vadd.f32 %v1753, %v1747
      %v1755 = vadd.f32 %v1754, %v1748
      %v1756 = vadd.f32 %v1755, %v1749
      %v1757 = vrot.slane %v1756, 4
      %v1758 = vadd.f32 %v1756, %v1757
      %v1759 = vrot.slane %v1758, 2
      %v1760 = vadd.f32 %v1758, %v1759
      %v1761 = vrot.slane %v1760, 1
      %v1762 = vadd.f32 %v1760, %v1761
      %1763 = vst [vmem:[%s268] sm:$0x1] %v1762
      %p1764 = scmp.lt.s32.totalorder %s18, 1
      %s1765 = scalar_select %p1764, %s18, 1
      %s1766 = smul.addr %s1765, 8
      %s1767 = smul.addr %s1766, 4
      %s1768 = scalar_lea.vmem %s4, %s1767
      %p1769 = scmp.lt.s32.totalorder %s18, 1
      %s1770 = scalar_select %p1769, %s18, 1
      %s1771 = scalar_lea.vmem %s5, %s1770
      %p1772 = scmp.lt.s32.totalorder %s18, 1
      %s1773 = scalar_select %p1772, %s18, 1
      %s1774 = scalar_lea.vmem %s6, %s1773
      // Predicated region
      $region37: #{basic_block_forward.4} parent=35 // pred_check
        %p1775 = pneg %p125
      $region38: #{basic_block_forward.4} parent=35 // pred_check_branch
        %1777 = sbr.rel (%p1775) target = $region40
      $region39: #{basic_block_forward.4} parent=35 // pred_region
        _
      $region40: #{basic_block_forward.4} parent=35 // pred_fallthru
        _
      // Predicated region
      $region41: #{basic_block_forward.4} parent=35 // pred_check
        %p1778 = pneg %p151
      $region42: #{basic_block_forward.4} parent=35 // pred_check_branch
        %1780 = sbr.rel (%p1778) target = $region44
      $region43: #{basic_block_forward.4} parent=35 // pred_region
        _
      $region44: #{basic_block_forward.4} parent=35 // pred_fallthru
        _
      // Predicated region
      $region45: #{basic_block_forward.4} parent=35 // pred_check
        %p1781 = pneg %p177
      $region46: #{basic_block_forward.4} parent=35 // pred_check_branch
        %1783 = sbr.rel (%p1781) target = $region48
      $region47: #{basic_block_forward.4} parent=35 // pred_region
        _
      $region48: #{basic_block_forward.4} parent=35 // pred_fallthru
        _
    $region36: #{basic_block_forward.4} parent=5 // pred_fallthru
      _
    %p1784 = scmp.le.s32.totalorder 2, %s13
    // Predicated region
    $region49: #{basic_block_forward.4} parent=5 // pred_check
      %p1785 = pneg %p1784
    $region50: #{basic_block_forward.4} parent=5 // pred_check_branch
      %1787 = sbr.rel (%p1785) target = $region52
    $region51: #{basic_block_forward.4} parent=5 // pred_region
      %s1788 = ssub.s32 %s13, 2
      // Predicated region
      $region53: #{basic_block_forward.4} parent=51 // pred_check
        %p1789 = pneg %p131
      $region54: #{basic_block_forward.4} parent=51 // pred_check_branch
        %1791 = sbr.rel (%p1789) target = $region56
      $region55: #{basic_block_forward.4} parent=51 // pred_region
        %p1792 = scmp.lt.s32.totalorder %s19, 1
        %s1793 = scalar_select %p1792, %s19, 1
        %s1794 = smul.addr %s1793, 8
        %s1795 = smul.addr %s1794, 4
        %s1796 = scalar_lea.vmem %s4, %s1795
      $region56: #{basic_block_forward.4} parent=51 // pred_fallthru
        _
      // Predicated region
      $region57: #{basic_block_forward.4} parent=51 // pred_check
        %p1797 = pneg %p157
      $region58: #{basic_block_forward.4} parent=51 // pred_check_branch
        %1799 = sbr.rel (%p1797) target = $region60
      $region59: #{basic_block_forward.4} parent=51 // pred_region
        %p1800 = scmp.lt.s32.totalorder %s19, 1
        %s1801 = scalar_select %p1800, %s19, 1
        %s1802 = scalar_lea.vmem %s5, %s1801
      $region60: #{basic_block_forward.4} parent=51 // pred_fallthru
        _
      // Predicated region
      $region61: #{basic_block_forward.4} parent=51 // pred_check
        %p1803 = pneg %p183
      $region62: #{basic_block_forward.4} parent=51 // pred_check_branch
        %1805 = sbr.rel (%p1803) target = $region64
      $region63: #{basic_block_forward.4} parent=51 // pred_region
        %p1806 = scmp.lt.s32.totalorder %s19, 1
        %s1807 = scalar_select %p1806, %s19, 1
        %s1808 = scalar_lea.vmem %s6, %s1807
      $region64: #{basic_block_forward.4} parent=51 // pred_fallthru
        _
    $region52: #{basic_block_forward.4} parent=5 // pred_fallthru
      _
  $region6: #{basic_block_forward.4} parent=0 // loop_footer
    %s17 = sadd.s32 1, %s13
  $region7: #{basic_block_forward.4} parent=0 // loop_footer_branch
    %12 = sbr.rel target = $region3
  $region8: #{basic_block_forward.4} parent=0 // loop_exit
    _

</llo_original>
